<compile_context>
chip_gen: v7x
topology: tpu7x:2x2x1
jax: 0.10.0
libtpu: 0.0.40
codegen_flags: <defaults>
</compile_context>

<pallas_src>
import functools

import jax
import jax.numpy as jnp
from jax import lax
from jax.experimental import pallas as pl
from jax.experimental.pallas import tpu as pltpu

LANE = 128
SUBLANE = 8

# Scoped-VMEM limit: per-layer footprint (resident h + double-buffered int8
# adj tiles + weights + accumulator) stays well under 32 MiB for the node
# counts this path targets; 32 MiB is <= physical VMEM on v5e/v6e (128 MiB)
# and leaves headroom on v7x (64 MiB physical).
_VMEM_LIMIT_BYTES = 32 * 1024 * 1024


def _round_up(x, m):
    return ((x + m - 1) // m) * m


def _pad2(a, rows, cols):
    out = jnp.zeros((rows, cols), a.dtype)
    return out.at[: a.shape[0], : a.shape[1]].set(a)


# --------------------------------------------------------------------------
# Kernel 1: one GINConv layer (block-sparse tiled aggregation + fused MLP).
# --------------------------------------------------------------------------
def gin_conv_kernel(nz_ref, col_ref,                  # SMEM scalar prefetch (1-D)
                    adj_ref, h_ref,                   # int8 adj tile, resident bf16 h
                    w1_ref, b1_ref, w2_ref, b2_ref,
                    out_ref, acc_ref):
    i = pl.program_id(0)
    k = pl.program_id(1)
    nk = pl.num_programs(1)
    T = adj_ref.shape[0]

    @pl.when(k == 0)
    def _():
        acc_ref[...] = jnp.zeros_like(acc_ref)

    # Block-sparse skip: only spend MXU time on adjacency tiles with edges.
    # (The adj DMA for zero tiles is already skipped via the index_map remap.)
    @pl.when(nz_ref[i * nk + k] != 0)
    def _():
        hk = h_ref[pl.ds(pl.multiple_of(k * T, T), T), :]
        acc_ref[...] += jnp.dot(adj_ref[...].astype(jnp.bfloat16), hk,
                                preferred_element_type=jnp.float32)

    @pl.when(k == nk - 1)
    def _():
        # (1 + eps) * h_i + sum_{j in N(i)} h_j   (eps = 0, PyG default)
        hi = h_ref[pl.ds(pl.multiple_of(i * T, T), T), :]
        z = acc_ref[...] + hi.astype(jnp.float32)
        # MLP: Linear -> ReLU -> Linear -> ReLU  (bf16 operands, f32 accumulate)
        z = jnp.maximum(
            jnp.dot(z.astype(jnp.bfloat16), w1_ref[...],
                    preferred_element_type=jnp.float32) + b1_ref[...], 0.0)
        z = jnp.maximum(
            jnp.dot(z.astype(jnp.bfloat16), w2_ref[...],
                    preferred_element_type=jnp.float32) + b2_ref[...], 0.0)
        out_ref[...] = z.astype(out_ref.dtype)


# --------------------------------------------------------------------------
# Kernel 2: global_max_pool over node tiles + fused classifier.
# --------------------------------------------------------------------------
def pool_classifier_kernel(h_ref, seg_ref,
                           wc1_ref, bc1_ref, wc2_ref, bc2_ref,
                           out_ref, pool_ref):
    n = pl.program_id(0)
    neg = jnp.finfo(jnp.float32).min
    g_pad = pool_ref.shape[0]

    @pl.when(n == 0)
    def _():
        pool_ref[...] = jnp.full(pool_ref.shape, neg, dtype=pool_ref.dtype)

    h_f = h_ref[...].astype(jnp.float32)          # (TP, H_pad)
    seg = seg_ref[...]                            # (TP, 1) int32, -1 for padding
    # Hoisted (JAX does not CSE broadcast_in_dim inside the loop).
    g_ids = lax.broadcasted_iota(jnp.int32, (g_pad, h_f.shape[1]), 0)

    def body(g, pooled):
        mask = seg == g                                               # (TP, 1)
        tile_max = jnp.max(jnp.where(mask, h_f, neg), axis=0,
                           keepdims=True)                             # (1, H_pad)
        upd = jnp.maximum(pooled, tile_max)                           # (g_pad, H_pad)
        return jnp.where(g_ids == g, upd, pooled)

    pool_ref[...] = lax.fori_loop(0, g_pad, body, pool_ref[...])

    @pl.when(n == pl.num_programs(0) - 1)
    def _():
        p = pool_ref[...]
        c = jnp.maximum(
            jnp.dot(p.astype(jnp.bfloat16), wc1_ref[...],
                    preferred_element_type=jnp.float32) + bc1_ref[...], 0.0)
        # TODO(synk): dropout is inference-mode identity here (no RNG mask).
        out_ref[...] = jnp.dot(c.astype(jnp.bfloat16), wc2_ref[...],
                               preferred_element_type=jnp.float32) + bc2_ref[...]


# --------------------------------------------------------------------------
# Wrapper: padding / layout glue + per-layer pallas_calls.
# --------------------------------------------------------------------------
def gin_forward(x, edge_index, batch, params, *, num_graphs, hidden_channels,
                out_channels):
    N, F = x.shape
    G = num_graphs
    src = edge_index[0].astype(jnp.int32)
    dst = edge_index[1].astype(jnp.int32)

    # Node tile T in {128, 256, 512} so that TP = min(256, T) always divides N_pad.
    T = min(512, max(LANE, pl.next_power_of_2(N)))
    N_pad = _round_up(N, T)
    nI = nK = N_pad // T
    TP = min(256, T)

    F_pad = _round_up(F, LANE)
    H_pad = _round_up(hidden_channels, LANE)
    O_pad = _round_up(out_channels, LANE)
    G_pad = _round_up(G, SUBLANE)

    f32, bf16 = jnp.float32, jnp.bfloat16

    # ---- padded / cast inputs (plain-JAX glue) ----
    x_p = jnp.zeros((N_pad, F_pad), f32).at[:N, :F].set(x.astype(f32)).astype(bf16)

    # Dense adjacency in int8 (exact for edge multiplicity <= 127):
    # adj[dst, src] += 1, i.e. aggregation is out = adj @ h.
    adj_p = jnp.zeros((N_pad, N_pad), jnp.int8).at[dst, src].add(jnp.int8(1))

    # Per-tile nonzero flags built O(E) from the edge list (no O(N^2) pass),
    # flattened to 1-D for the SMEM scalar prefetch.
    tile_cnt = jnp.zeros((nI, nK), jnp.int32).at[dst // T, src // T].add(1)
    nz = (tile_cnt > 0).astype(jnp.int32)
    # Splash-style DMA-skip remap: col[i, k] = most recent nonzero k' <= k in
    # row i (else the row's first nonzero column). Repeating the previous
    # block index makes the pipeline skip the adj DMA for all-zero tiles.
    k_idx = jnp.arange(nK, dtype=jnp.int32)[None, :]
    last_nz = lax.cummax(jnp.where(nz > 0, k_idx, -1), axis=1)
    first_nz = jnp.argmax(nz, axis=1).astype(jnp.int32)[:, None]
    adj_col = jnp.where(last_nz >= 0, last_nz, first_nz).astype(jnp.int32)
    nz_flat = nz.reshape(-1)
    col_flat = adj_col.reshape(-1)

    # Segment ids as a lane-1 int32 column (tiny); padded nodes -> -1 (never pooled).
    seg_col = jnp.full((N_pad, 1), -1, jnp.int32).at[:N, 0].set(batch.astype(jnp.int32))

    # ---- padded / cast parameters (exact: padded rows/cols/biases are zero) ----
    conv_params = []
    for (w1, b1, w2, b2) in params[:-1]:
        fin_pad = _round_up(w1.shape[0], LANE)
        conv_params.append((
            _pad2(w1, fin_pad, H_pad).astype(bf16),
            _pad2(b1, 1, H_pad).astype(f32),
            _pad2(w2, H_pad, H_pad).astype(bf16),
            _pad2(b2, 1, H_pad).astype(f32),
        ))
    wc1, bc1, wc2, bc2 = params[-1]
    wc1_p = _pad2(wc1, H_pad, H_pad).astype(bf16)
    bc1_p = _pad2(bc1, 1, H_pad).astype(f32)
    wc2_p = _pad2(wc2, H_pad, O_pad).astype(bf16)
    bc2_p = _pad2(bc2, 1, O_pad).astype(f32)

    # ---- GINConv layers: one tiled, pipelined pallas_call per layer ----
    # TODO(synk): adj-resident multi-layer fusion (VMEM permitting, ceiling is
    # roughly halved on v7x's 64 MiB) would save (num_layers-1) adj reads.
    h = x_p
    for (w1, b1, w2, b2) in conv_params:
        Hin = w1.shape[0]   # padded input width of this layer (F_pad or H_pad)
        grid_spec = pltpu.PrefetchScalarGridSpec(
            num_scalar_prefetch=2,
            grid=(nI, nK),
            in_specs=[
                # adj tile: remapped column -> zero tiles skip the HBM DMA.
                pl.BlockSpec((T, T),
                             lambda i, k, nz_r, col_r: (i, col_r[i * nK + k])),
                # h resident in VMEM for the whole layer (read from HBM once).
                pl.BlockSpec((N_pad, Hin), lambda i, k, nz_r, col_r: (0, 0)),
                pl.BlockSpec((Hin, H_pad), lambda i, k, nz_r, col_r: (0, 0)),    # w1
                pl.BlockSpec((1, H_pad), lambda i, k, nz_r, col_r: (0, 0)),      # b1
                pl.BlockSpec((H_pad, H_pad), lambda i, k, nz_r, col_r: (0, 0)),  # w2
                pl.BlockSpec((1, H_pad), lambda i, k, nz_r, col_r: (0, 0)),      # b2
            ],
            out_specs=pl.BlockSpec((T, H_pad), lambda i, k, nz_r, col_r: (i, 0)),
            scratch_shapes=[pltpu.VMEM((T, Hin), jnp.float32)],
        )
        flops = (2 * N_pad * N_pad * Hin
                 + 2 * N_pad * Hin * H_pad
                 + 2 * N_pad * H_pad * H_pad)
        bytes_accessed = (N_pad * N_pad * 1            # adj (int8)
                          + N_pad * Hin * 2            # resident h, read once (bf16)
                          + (Hin + H_pad) * H_pad * 2  # weights (bf16)
                          + N_pad * H_pad * 2)         # output h (bf16)
        h = pl.pallas_call(
            gin_conv_kernel,
            grid_spec=grid_spec,
            out_shape=jax.ShapeDtypeStruct((N_pad, H_pad), bf16),
            compiler_params=pltpu.CompilerParams(
                dimension_semantics=("parallel", "arbitrary"),
                vmem_limit_bytes=_VMEM_LIMIT_BYTES),
            cost_estimate=pl.CostEstimate(
                flops=flops, transcendentals=0, bytes_accessed=bytes_accessed),
        )(nz_flat, col_flat, adj_p, h, w1, b1, w2, b2)

    # ---- global_max_pool + classifier (single tiled pallas_call) ----
    out_pad = pl.pallas_call(
        pool_classifier_kernel,
        grid=(N_pad // TP,),
        in_specs=[
            pl.BlockSpec((TP, H_pad), lambda n: (n, 0)),   # h tile
            pl.BlockSpec((TP, 1), lambda n: (n, 0)),       # segment ids (int32)
            pl.BlockSpec((H_pad, H_pad), lambda n: (0, 0)),  # wc1
            pl.BlockSpec((1, H_pad), lambda n: (0, 0)),      # bc1
            pl.BlockSpec((H_pad, O_pad), lambda n: (0, 0)),  # wc2
            pl.BlockSpec((1, O_pad), lambda n: (0, 0)),      # bc2
        ],
        out_specs=pl.BlockSpec((G_pad, O_pad), lambda n: (0, 0)),
        scratch_shapes=[pltpu.VMEM((G_pad, H_pad), jnp.float32)],
        out_shape=jax.ShapeDtypeStruct((G_pad, O_pad), jnp.float32),
        compiler_params=pltpu.CompilerParams(
            dimension_semantics=("arbitrary",),
            vmem_limit_bytes=_VMEM_LIMIT_BYTES),
    )(h, seg_col, wc1_p, bc1_p, wc2_p, bc2_p)

    return out_pad[:G, :out_channels]


# --------------------------------------------------------------------------
# Pure-JAX references.
# --------------------------------------------------------------------------
def init_linear(key, fan_in, fan_out):
    """PyTorch-style Linear init, weight returned pre-transposed as (in, out)."""
    kw, kb = jax.random.split(key)
    bound = 1.0 / jnp.sqrt(jnp.float32(fan_in))
    w = jax.random.uniform(kw, (fan_in, fan_out), jnp.float32, -bound, bound)
    b = jax.random.uniform(kb, (1, fan_out), jnp.float32, -bound, bound)
    return w, b


def reference_forward(x, adj, batch, params, num_graphs, *, emulate_bf16):
    """Reference. emulate_bf16=True mirrors the kernel's bf16-operand casts."""
    f32 = jnp.float32

    def c(a):
        return a.astype(jnp.bfloat16) if emulate_bf16 else a.astype(f32)

    h = x.astype(f32)
    for (w1, b1, w2, b2) in params[:-1]:
        agg = jnp.dot(c(adj), c(h), preferred_element_type=f32)
        z = c(h).astype(f32) + agg
        z = jnp.maximum(jnp.dot(c(z), c(w1), preferred_element_type=f32) + b1, 0.0)
        z = jnp.maximum(jnp.dot(c(z), c(w2), preferred_element_type=f32) + b2, 0.0)
        h = c(z).astype(f32)

    member = batch[:, None] == jnp.arange(num_graphs)[None, :]          # (N, G)
    pooled = jnp.max(
        jnp.where(member.T[:, :, None], h[None, :, :], -1e30), axis=1)  # (G, H)
    wc1, bc1, wc2, bc2 = params[-1]
    cc = jnp.maximum(jnp.dot(c(pooled), c(wc1), preferred_element_type=f32) + bc1, 0.0)
    return jnp.dot(c(cc), c(wc2), preferred_element_type=f32) + bc2


# --------------------------------------------------------------------------
# Demo / self-test.
# --------------------------------------------------------------------------
if __name__ == "__main__":
    input_channel = 4
    hidden_channels = 32
    num_layers = 3
    out_channels = 1
    nodes_per_graph = 8
    num_graphs = 2
    N = nodes_per_graph * num_graphs

    key = jax.random.PRNGKey(0)
    k_x, k_params = jax.random.split(key)

    # Integer-valued node features (module signature says LongTensor), cast to
    # float32 for the first Linear.
    x = jax.random.randint(k_x, (N, input_channel), 0, 3).astype(jnp.float32)

    # Two disjoint ring graphs, edges in both directions.
    src_list, dst_list = [], []
    for g in range(num_graphs):
        base = g * nodes_per_graph
        for i in range(nodes_per_graph):
            a = base + i
            b = base + (i + 1) % nodes_per_graph
            src_list += [a, b]
            dst_list += [b, a]
    edge_index = jnp.array([src_list, dst_list], dtype=jnp.int32)   # (2, E)

    # Dense adjacency for the reference only: adj[dst, src] += 1.
    adj = jnp.zeros((N, N), jnp.float32).at[edge_index[1], edge_index[0]].add(1.0)

    # batch vector: node -> graph id
    batch = jnp.repeat(jnp.arange(num_graphs, dtype=jnp.int32), nodes_per_graph)

    # Deterministic parameter init (shapes from the module's __init__).
    params = []
    keys = jax.random.split(k_params, 2 * num_layers + 2)
    ki = 0
    w1, b1 = init_linear(keys[ki], input_channel, hidden_channels); ki += 1
    w2, b2 = init_linear(keys[ki], hidden_channels, hidden_channels); ki += 1
    params.append((w1, b1, w2, b2))
    for _ in range(num_layers - 1):
        w1, b1 = init_linear(keys[ki], hidden_channels, hidden_channels); ki += 1
        w2, b2 = init_linear(keys[ki], hidden_channels, hidden_channels); ki += 1
        params.append((w1, b1, w2, b2))
    wc1, bc1 = init_linear(keys[ki], hidden_channels, hidden_channels); ki += 1
    wc2, bc2 = init_linear(keys[ki], hidden_channels, out_channels); ki += 1
    params.append((wc1, bc1, wc2, bc2))

    run = jax.jit(functools.partial(
        gin_forward,
        num_graphs=num_graphs,
        hidden_channels=hidden_channels,
        out_channels=out_channels))
    out = jax.block_until_ready(run(x, edge_index, batch, params))

    ref_bf16 = reference_forward(x, adj, batch, params, num_graphs,
                                 emulate_bf16=True)
    ref_f32 = reference_forward(x, adj, batch, params, num_graphs,
                                emulate_bf16=False)

    assert out.shape == (num_graphs, out_channels)
    # Tight check vs a reference that mirrors the kernel's bf16-operand math.
    assert jnp.allclose(out, ref_bf16, atol=1e-2, rtol=1e-2), (out, ref_bf16)
    # Loose check vs the full-f32 module semantics (bf16 operand drift only).
    assert jnp.allclose(out, ref_f32, atol=1e-1, rtol=1e-1), (out, ref_f32)

    print("KERNEL_OK")
</pallas_src>

<mosaic_0001>
module attributes {stable_mosaic.version = 11 : i64} {
  func.func private @main(%arg0: i32) attributes {dimension_semantics = [#tpu.dimension_semantics<core_parallel>], iteration_bounds = array<i64: 2>, tpu.core_type = #tpu.core_type<sc_scalar_subcore>, window_params = []} {
    return
  }
}

module attributes {stable_mosaic.version = 11 : i64} {
  func.func private @main(%arg0: i32) attributes {dimension_semantics = [#tpu.dimension_semantics<core_parallel>], iteration_bounds = array<i64: 2>, tpu.core_type = #tpu.core_type<sc_scalar_subcore>, window_params = []} {
    return
  }
}

module attributes {stable_mosaic.version = 11 : i64} {
  func.func @gin_conv_kernel(%arg0: i32, %arg1: i32, %arg2: memref<1xi32, #tpu.memory_space<smem>>, %arg3: memref<1xi32, #tpu.memory_space<smem>>, %arg4: memref<128x128xi8, #tpu.memory_space<vmem>>, %arg5: memref<128x128xbf16, #tpu.memory_space<vmem>>, %arg6: memref<128x128xbf16, #tpu.memory_space<vmem>>, %arg7: memref<1x128xf32, #tpu.memory_space<vmem>>, %arg8: memref<128x128xbf16, #tpu.memory_space<vmem>>, %arg9: memref<1x128xf32, #tpu.memory_space<vmem>>, %arg10: memref<128x128xbf16, #tpu.memory_space<vmem>>, %arg11: memref<128x128xf32, #tpu.memory_space<vmem>>) attributes {dimension_semantics = [#tpu.dimension_semantics<parallel>, #tpu.dimension_semantics<arbitrary>], iteration_bounds = array<i64: 1, 1>, scalar_prefetch = 2 : i64, scratch_operands = 1 : i64, tpu.core_type = #tpu.core_type<tc>, window_params = [{transform_indices = @transform_0, window_bounds = array<i64: 128, 128>}, {pipeline_mode = #tpu.pipeline_mode<synchronous>, transform_indices = @transform_1, window_bounds = array<i64: 128, 128>}, {pipeline_mode = #tpu.pipeline_mode<synchronous>, transform_indices = @transform_2, window_bounds = array<i64: 128, 128>}, {pipeline_mode = #tpu.pipeline_mode<synchronous>, transform_indices = @transform_3, window_bounds = array<i64: 1, 128>}, {pipeline_mode = #tpu.pipeline_mode<synchronous>, transform_indices = @transform_4, window_bounds = array<i64: 128, 128>}, {pipeline_mode = #tpu.pipeline_mode<synchronous>, transform_indices = @transform_5, window_bounds = array<i64: 1, 128>}, {transform_indices = @transform_6, window_bounds = array<i64: 128, 128>}]} {
    %c0_i32 = arith.constant 0 : i32
    %0 = arith.cmpi eq, %arg1, %c0_i32 : i32
    %1 = arith.extui %0 : i1 to i32
    %c0_i32_0 = arith.constant 0 : i32
    %2 = arith.cmpi ne, %1, %c0_i32_0 : i32
    scf.if %2 {
      %cst = arith.constant 0.000000e+00 : f32
      %13 = vector.broadcast %cst : f32 to vector<128x128xf32>
      %c0 = arith.constant 0 : index
      %c0_5 = arith.constant 0 : index
      %14 = vector.load %arg11[%c0, %c0_5] : memref<128x128xf32, #tpu.memory_space<vmem>>, vector<128x128xf32>
      tpu.vector_store %arg11[%c0, %c0_5], %13 {strides = array<i32>} : memref<128x128xf32, #tpu.memory_space<vmem>>, vector<128x128xf32>,
    } else {
    }
    %c1_i32 = arith.constant 1 : i32
    %3 = arith.muli %arg0, %c1_i32 : i32
    %4 = arith.addi %3, %arg1 : i32
    %5 = arith.index_cast %4 : i32 to index
    %6 = memref.load %arg2[%5] : memref<1xi32, #tpu.memory_space<smem>>
    %c0_i32_1 = arith.constant 0 : i32
    %7 = arith.cmpi ne, %6, %c0_i32_1 : i32
    %8 = arith.extui %7 : i1 to i32
    %c0_i32_2 = arith.constant 0 : i32
    %9 = arith.cmpi ne, %8, %c0_i32_2 : i32
    scf.if %9 {
      %c128_i32 = arith.constant 128 : i32
      %13 = arith.muli %arg1, %c128_i32 : i32
      %14 = tpu.assume_multiple %13, 128 : i32
      %15 = arith.index_cast %14 : i32 to index
      %c0 = arith.constant 0 : index
      %16 = vector.load %arg5[%15, %c0] : memref<128x128xbf16, #tpu.memory_space<vmem>>, vector<128x128xbf16>
      %c0_5 = arith.constant 0 : index
      %c0_6 = arith.constant 0 : index
      %17 = vector.load %arg11[%c0_5, %c0_6] : memref<128x128xf32, #tpu.memory_space<vmem>>, vector<128x128xf32>
      %c0_7 = arith.constant 0 : index
      %c0_8 = arith.constant 0 : index
      %18 = vector.load %arg4[%c0_7, %c0_8] : memref<128x128xi8, #tpu.memory_space<vmem>>, vector<128x128xi8>
      %19 = arith.sitofp %18 : vector<128x128xi8> to vector<128x128xbf16>
      %cst = arith.constant dense<0.000000e+00> : vector<128x128xf32>
      %20 = tpu.matmul %19, %16, %cst {dimension_numbers = #tpu.dot_dimension_numbers<[1], [0], [0], [1], [0, 0, 1, 1], [], []>} : vector<128x128xbf16>, vector<128x128xbf16>, vector<128x128xf32> -> vector<128x128xf32>
      %21 = arith.addf %17, %20 : vector<128x128xf32>
      %c0_9 = arith.constant 0 : index
      %c0_10 = arith.constant 0 : index
      %22 = vector.load %arg11[%c0_9, %c0_10] : memref<128x128xf32, #tpu.memory_space<vmem>>, vector<128x128xf32>
      tpu.vector_store %arg11[%c0_9, %c0_10], %21 {strides = array<i32>} : memref<128x128xf32, #tpu.memory_space<vmem>>, vector<128x128xf32>,
    } else {
    }
    %c0_i32_3 = arith.constant 0 : i32
    %10 = arith.cmpi eq, %arg1, %c0_i32_3 : i32
    %11 = arith.extui %10 : i1 to i32
    %c0_i32_4 = arith.constant 0 : i32
    %12 = arith.cmpi ne, %11, %c0_i32_4 : i32
    scf.if %12 {
      %c128_i32 = arith.constant 128 : i32
      %13 = arith.muli %arg0, %c128_i32 : i32
      %14 = tpu.assume_multiple %13, 128 : i32
      %15 = arith.index_cast %14 : i32 to index
      %c0 = arith.constant 0 : index
      %16 = vector.load %arg5[%15, %c0] : memref<128x128xbf16, #tpu.memory_space<vmem>>, vector<128x128xbf16>
      %c0_5 = arith.constant 0 : index
      %c0_6 = arith.constant 0 : index
      %17 = vector.load %arg11[%c0_5, %c0_6] : memref<128x128xf32, #tpu.memory_space<vmem>>, vector<128x128xf32>
      %18 = arith.extf %16 : vector<128x128xbf16> to vector<128x128xf32>
      %19 = arith.addf %17, %18 : vector<128x128xf32>
      %20 = arith.truncf %19 : vector<128x128xf32> to vector<128x128xbf16>
      %c0_7 = arith.constant 0 : index
      %c0_8 = arith.constant 0 : index
      %21 = vector.load %arg6[%c0_7, %c0_8] : memref<128x128xbf16, #tpu.memory_space<vmem>>, vector<128x128xbf16>
      %cst = arith.constant dense<0.000000e+00> : vector<128x128xf32>
      %22 = tpu.matmul %20, %21, %cst {dimension_numbers = #tpu.dot_dimension_numbers<[1], [0], [0], [1], [0, 0, 1, 1], [], []>} : vector<128x128xbf16>, vector<128x128xbf16>, vector<128x128xf32> -> vector<128x128xf32>
      %c0_9 = arith.constant 0 : index
      %c0_10 = arith.constant 0 : index
      %23 = vector.load %arg7[%c0_9, %c0_10] : memref<1x128xf32, #tpu.memory_space<vmem>>, vector<1x128xf32>
      %24 = vector.broadcast %23 : vector<1x128xf32> to vector<128x128xf32>
      %25 = arith.addf %22, %24 : vector<128x128xf32>
      %cst_11 = arith.constant 0.000000e+00 : f32
      %26 = vector.broadcast %cst_11 : f32 to vector<128x128xf32>
      %27 = arith.maximumf %25, %26 : vector<128x128xf32>
      %28 = arith.truncf %27 : vector<128x128xf32> to vector<128x128xbf16>
      %c0_12 = arith.constant 0 : index
      %c0_13 = arith.constant 0 : index
      %29 = vector.load %arg8[%c0_12, %c0_13] : memref<128x128xbf16, #tpu.memory_space<vmem>>, vector<128x128xbf16>
      %cst_14 = arith.constant dense<0.000000e+00> : vector<128x128xf32>
      %30 = tpu.matmul %28, %29, %cst_14 {dimension_numbers = #tpu.dot_dimension_numbers<[1], [0], [0], [1], [0, 0, 1, 1], [], []>} : vector<128x128xbf16>, vector<128x128xbf16>, vector<128x128xf32> -> vector<128x128xf32>
      %c0_15 = arith.constant 0 : index
      %c0_16 = arith.constant 0 : index
      %31 = vector.load %arg9[%c0_15, %c0_16] : memref<1x128xf32, #tpu.memory_space<vmem>>, vector<1x128xf32>
      %32 = vector.broadcast %31 : vector<1x128xf32> to vector<128x128xf32>
      %33 = arith.addf %30, %32 : vector<128x128xf32>
      %cst_17 = arith.constant 0.000000e+00 : f32
      %34 = vector.broadcast %cst_17 : f32 to vector<128x128xf32>
      %35 = arith.maximumf %33, %34 : vector<128x128xf32>
      %36 = arith.truncf %35 : vector<128x128xf32> to vector<128x128xbf16>
      %c0_18 = arith.constant 0 : index
      %c0_19 = arith.constant 0 : index
      %37 = vector.load %arg10[%c0_18, %c0_19] : memref<128x128xbf16, #tpu.memory_space<vmem>>, vector<128x128xbf16>
      tpu.vector_store %arg10[%c0_18, %c0_19], %36 {strides = array<i32>} : memref<128x128xbf16, #tpu.memory_space<vmem>>, vector<128x128xbf16>,
    } else {
    }
    return
  }
  func.func @transform_0(%arg0: i32, %arg1: i32, %arg2: memref<1xi32, #tpu.memory_space<smem>>, %arg3: memref<1xi32, #tpu.memory_space<smem>>) -> (i32, i32) {
    %c1_i32 = arith.constant 1 : i32
    %0 = arith.muli %arg0, %c1_i32 : i32
    %1 = arith.addi %0, %arg1 : i32
    %2 = arith.index_cast %1 : i32 to index
    %3 = memref.load %arg3[%2] : memref<1xi32, #tpu.memory_space<smem>>
    %c0_i32 = arith.constant 0 : i32
    return %arg0, %3 : i32, i32
  }
  func.func @transform_1(%arg0: i32, %arg1: i32, %arg2: memref<1xi32, #tpu.memory_space<smem>>, %arg3: memref<1xi32, #tpu.memory_space<smem>>) -> (i32, i32) {
    %c0_i32 = arith.constant 0 : i32
    %c0_i32_0 = arith.constant 0 : i32
    %c0_i32_1 = arith.constant 0 : i32
    return %c0_i32, %c0_i32_0 : i32, i32
  }
  func.func @transform_2(%arg0: i32, %arg1: i32, %arg2: memref<1xi32, #tpu.memory_space<smem>>, %arg3: memref<1xi32, #tpu.memory_space<smem>>) -> (i32, i32) {
    %c0_i32 = arith.constant 0 : i32
    %c0_i32_0 = arith.constant 0 : i32
    %c0_i32_1 = arith.constant 0 : i32
    return %c0_i32, %c0_i32_0 : i32, i32
  }
  func.func @transform_3(%arg0: i32, %arg1: i32, %arg2: memref<1xi32, #tpu.memory_space<smem>>, %arg3: memref<1xi32, #tpu.memory_space<smem>>) -> (i32, i32) {
    %c0_i32 = arith.constant 0 : i32
    %c0_i32_0 = arith.constant 0 : i32
    %c0_i32_1 = arith.constant 0 : i32
    return %c0_i32, %c0_i32_0 : i32, i32
  }
  func.func @transform_4(%arg0: i32, %arg1: i32, %arg2: memref<1xi32, #tpu.memory_space<smem>>, %arg3: memref<1xi32, #tpu.memory_space<smem>>) -> (i32, i32) {
    %c0_i32 = arith.constant 0 : i32
    %c0_i32_0 = arith.constant 0 : i32
    %c0_i32_1 = arith.constant 0 : i32
    return %c0_i32, %c0_i32_0 : i32, i32
  }
  func.func @transform_5(%arg0: i32, %arg1: i32, %arg2: memref<1xi32, #tpu.memory_space<smem>>, %arg3: memref<1xi32, #tpu.memory_space<smem>>) -> (i32, i32) {
    %c0_i32 = arith.constant 0 : i32
    %c0_i32_0 = arith.constant 0 : i32
    %c0_i32_1 = arith.constant 0 : i32
    return %c0_i32, %c0_i32_0 : i32, i32
  }
  func.func @transform_6(%arg0: i32, %arg1: i32, %arg2: memref<1xi32, #tpu.memory_space<smem>>, %arg3: memref<1xi32, #tpu.memory_space<smem>>) -> (i32, i32) {
    %c0_i32 = arith.constant 0 : i32
    %c0_i32_0 = arith.constant 0 : i32
    return %arg0, %c0_i32 : i32, i32
  }
}

module attributes {stable_mosaic.version = 11 : i64} {
  func.func @pool_classifier_kernel(%arg0: i32, %arg1: memref<128x128xbf16, #tpu.memory_space<vmem>>, %arg2: memref<128x1xi32, #tpu.memory_space<vmem>>, %arg3: memref<128x128xbf16, #tpu.memory_space<vmem>>, %arg4: memref<1x128xf32, #tpu.memory_space<vmem>>, %arg5: memref<128x128xbf16, #tpu.memory_space<vmem>>, %arg6: memref<1x128xf32, #tpu.memory_space<vmem>>, %arg7: memref<8x128xf32, #tpu.memory_space<vmem>>, %arg8: memref<8x128xf32, #tpu.memory_space<vmem>>) attributes {dimension_semantics = [#tpu.dimension_semantics<arbitrary>], iteration_bounds = array<i64: 1>, scalar_prefetch = 0 : i64, scratch_operands = 1 : i64, tpu.core_type = #tpu.core_type<tc>, window_params = [{transform_indices = @transform_0, window_bounds = array<i64: 128, 128>}, {transform_indices = @transform_1, window_bounds = array<i64: 128, 1>}, {pipeline_mode = #tpu.pipeline_mode<synchronous>, transform_indices = @transform_2, window_bounds = array<i64: 128, 128>}, {pipeline_mode = #tpu.pipeline_mode<synchronous>, transform_indices = @transform_3, window_bounds = array<i64: 1, 128>}, {pipeline_mode = #tpu.pipeline_mode<synchronous>, transform_indices = @transform_4, window_bounds = array<i64: 128, 128>}, {pipeline_mode = #tpu.pipeline_mode<synchronous>, transform_indices = @transform_5, window_bounds = array<i64: 1, 128>}, {pipeline_mode = #tpu.pipeline_mode<synchronous>, transform_indices = @transform_6, window_bounds = array<i64: 8, 128>}]} {
    %c0_i32 = arith.constant 0 : i32
    %0 = arith.cmpi eq, %arg0, %c0_i32 : i32
    %1 = arith.extui %0 : i1 to i32
    %c0_i32_0 = arith.constant 0 : i32
    %2 = arith.cmpi ne, %1, %c0_i32_0 : i32
    scf.if %2 {
      %cst = arith.constant -3.40282347E+38 : f32
      %14 = vector.broadcast %cst : f32 to vector<8x128xf32>
      %c0_12 = arith.constant 0 : index
      %c0_13 = arith.constant 0 : index
      %15 = vector.load %arg8[%c0_12, %c0_13] : memref<8x128xf32, #tpu.memory_space<vmem>>, vector<8x128xf32>
      tpu.vector_store %arg8[%c0_12, %c0_13], %14 {strides = array<i32>} : memref<8x128xf32, #tpu.memory_space<vmem>>, vector<8x128xf32>,
    } else {
    }
    %c0 = arith.constant 0 : index
    %c0_1 = arith.constant 0 : index
    %3 = vector.load %arg1[%c0, %c0_1] : memref<128x128xbf16, #tpu.memory_space<vmem>>, vector<128x128xbf16>
    %4 = arith.extf %3 : vector<128x128xbf16> to vector<128x128xf32>
    %c0_2 = arith.constant 0 : index
    %c0_3 = arith.constant 0 : index
    %5 = vector.load %arg2[%c0_2, %c0_3] : memref<128x1xi32, #tpu.memory_space<vmem>>, vector<128x1xi32>
    %6 = tpu.iota {dimensions = array<i32: 0>} : vector<8x128xi32>
    %c0_4 = arith.constant 0 : index
    %c0_5 = arith.constant 0 : index
    %7 = vector.load %arg8[%c0_4, %c0_5] : memref<8x128xf32, #tpu.memory_space<vmem>>, vector<8x128xf32>
    %c0_i32_6 = arith.constant 0 : i32
    %c8_i32 = arith.constant 8 : i32
    %8 = arith.addi %c0_i32_6, %c8_i32 : i32
    %c1_i32 = arith.constant 1 : i32
    %9 = scf.for %arg9 = %c0_i32_6 to %8 step %c1_i32 iter_args(%arg10 = %7) -> (vector<8x128xf32>)  : i32 {
      %14 = vector.broadcast %arg9 : i32 to vector<128x1xi32>
      %15 = arith.cmpi eq, %5, %14 : vector<128x1xi32>
      %cst = arith.constant -3.40282347E+38 : f32
      %16 = vector.shape_cast %15 : vector<128x1xi1> to vector<128x1xi1>
      %17 = vector.broadcast %16 : vector<128x1xi1> to vector<128x128xi1>
      %18 = vector.broadcast %cst : f32 to vector<128x128xf32>
      %19 = arith.select %17, %4, %18 : vector<128x128xi1>, vector<128x128xf32>
      %cst_12 = arith.constant dense<0xFF800000> : vector<128xf32>
      %20 = vector.multi_reduction <maximumf>, %19, %cst_12 [0] : vector<128x128xf32> to vector<128xf32>
      %21 = vector.shape_cast %20 : vector<128xf32> to vector<1x128xf32>
      %22 = vector.broadcast %21 : vector<1x128xf32> to vector<8x128xf32>
      %23 = arith.maximumf %arg10, %22 : vector<8x128xf32>
      %24 = vector.broadcast %arg9 : i32 to vector<8x128xi32>
      %25 = arith.cmpi eq, %6, %24 : vector<8x128xi32>
      %26 = arith.select %25, %23, %arg10 : vector<8x128xi1>, vector<8x128xf32>
      scf.yield %26 : vector<8x128xf32>
    }
    %c8_i32_7 = arith.constant 8 : i32
    %c0_8 = arith.constant 0 : index
    %c0_9 = arith.constant 0 : index
    %10 = vector.load %arg8[%c0_8, %c0_9] : memref<8x128xf32, #tpu.memory_space<vmem>>, vector<8x128xf32>
    tpu.vector_store %arg8[%c0_8, %c0_9], %9 {strides = array<i32>} : memref<8x128xf32, #tpu.memory_space<vmem>>, vector<8x128xf32>,
    %c0_i32_10 = arith.constant 0 : i32
    %11 = arith.cmpi eq, %arg0, %c0_i32_10 : i32
    %12 = arith.extui %11 : i1 to i32
    %c0_i32_11 = arith.constant 0 : i32
    %13 = arith.cmpi ne, %12, %c0_i32_11 : i32
    scf.if %13 {
      %c0_12 = arith.constant 0 : index
      %c0_13 = arith.constant 0 : index
      %14 = vector.load %arg8[%c0_12, %c0_13] : memref<8x128xf32, #tpu.memory_space<vmem>>, vector<8x128xf32>
      %15 = arith.truncf %14 : vector<8x128xf32> to vector<8x128xbf16>
      %c0_14 = arith.constant 0 : index
      %c0_15 = arith.constant 0 : index
      %16 = vector.load %arg3[%c0_14, %c0_15] : memref<128x128xbf16, #tpu.memory_space<vmem>>, vector<128x128xbf16>
      %cst = arith.constant dense<0.000000e+00> : vector<8x128xf32>
      %17 = tpu.matmul %15, %16, %cst {dimension_numbers = #tpu.dot_dimension_numbers<[1], [0], [0], [1], [0, 0, 1, 1], [], []>} : vector<8x128xbf16>, vector<128x128xbf16>, vector<8x128xf32> -> vector<8x128xf32>
      %c0_16 = arith.constant 0 : index
      %c0_17 = arith.constant 0 : index
      %18 = vector.load %arg4[%c0_16, %c0_17] : memref<1x128xf32, #tpu.memory_space<vmem>>, vector<1x128xf32>
      %19 = vector.broadcast %18 : vector<1x128xf32> to vector<8x128xf32>
      %20 = arith.addf %17, %19 : vector<8x128xf32>
      %cst_18 = arith.constant 0.000000e+00 : f32
      %21 = vector.broadcast %cst_18 : f32 to vector<8x128xf32>
      %22 = arith.maximumf %20, %21 : vector<8x128xf32>
      %23 = arith.truncf %22 : vector<8x128xf32> to vector<8x128xbf16>
      %c0_19 = arith.constant 0 : index
      %c0_20 = arith.constant 0 : index
      %24 = vector.load %arg5[%c0_19, %c0_20] : memref<128x128xbf16, #tpu.memory_space<vmem>>, vector<128x128xbf16>
      %cst_21 = arith.constant dense<0.000000e+00> : vector<8x128xf32>
      %25 = tpu.matmul %23, %24, %cst_21 {dimension_numbers = #tpu.dot_dimension_numbers<[1], [0], [0], [1], [0, 0, 1, 1], [], []>} : vector<8x128xbf16>, vector<128x128xbf16>, vector<8x128xf32> -> vector<8x128xf32>
      %c0_22 = arith.constant 0 : index
      %c0_23 = arith.constant 0 : index
      %26 = vector.load %arg6[%c0_22, %c0_23] : memref<1x128xf32, #tpu.memory_space<vmem>>, vector<1x128xf32>
      %27 = vector.broadcast %26 : vector<1x128xf32> to vector<8x128xf32>
      %28 = arith.addf %25, %27 : vector<8x128xf32>
      %c0_24 = arith.constant 0 : index
      %c0_25 = arith.constant 0 : index
      %29 = vector.load %arg7[%c0_24, %c0_25] : memref<8x128xf32, #tpu.memory_space<vmem>>, vector<8x128xf32>
      tpu.vector_store %arg7[%c0_24, %c0_25], %28 {strides = array<i32>} : memref<8x128xf32, #tpu.memory_space<vmem>>, vector<8x128xf32>,
    } else {
    }
    return
  }
  func.func @transform_0(%arg0: i32) -> (i32, i32) {
    %c0_i32 = arith.constant 0 : i32
    %c0_i32_0 = arith.constant 0 : i32
    return %arg0, %c0_i32 : i32, i32
  }
  func.func @transform_1(%arg0: i32) -> (i32, i32) {
    %c0_i32 = arith.constant 0 : i32
    %c0_i32_0 = arith.constant 0 : i32
    return %arg0, %c0_i32 : i32, i32
  }
  func.func @transform_2(%arg0: i32) -> (i32, i32) {
    %c0_i32 = arith.constant 0 : i32
    %c0_i32_0 = arith.constant 0 : i32
    %c0_i32_1 = arith.constant 0 : i32
    return %c0_i32, %c0_i32_0 : i32, i32
  }
  func.func @transform_3(%arg0: i32) -> (i32, i32) {
    %c0_i32 = arith.constant 0 : i32
    %c0_i32_0 = arith.constant 0 : i32
    %c0_i32_1 = arith.constant 0 : i32
    return %c0_i32, %c0_i32_0 : i32, i32
  }
  func.func @transform_4(%arg0: i32) -> (i32, i32) {
    %c0_i32 = arith.constant 0 : i32
    %c0_i32_0 = arith.constant 0 : i32
    %c0_i32_1 = arith.constant 0 : i32
    return %c0_i32, %c0_i32_0 : i32, i32
  }
  func.func @transform_5(%arg0: i32) -> (i32, i32) {
    %c0_i32 = arith.constant 0 : i32
    %c0_i32_0 = arith.constant 0 : i32
    %c0_i32_1 = arith.constant 0 : i32
    return %c0_i32, %c0_i32_0 : i32, i32
  }
  func.func @transform_6(%arg0: i32) -> (i32, i32) {
    %c0_i32 = arith.constant 0 : i32
    %c0_i32_0 = arith.constant 0 : i32
    %c0_i32_1 = arith.constant 0 : i32
    return %c0_i32, %c0_i32_0 : i32, i32
  }
}

</mosaic_0001>

<llo_original>
// kernel: gin_forward.7
$region0: #{gin_forward.7}
  #allocation0 [shape = 'u32[]', space=smem, size = 0x4, offset = 0x4, fixed_abs, tag = 'smem constant byte address 0x4 - core index']
  #allocation1 [shape = 'u32[144,128]{1,0:T(1,128)}', space=vmem, size = 0x12000, scoped, tag = 'internal scratch']
  #allocation2 [shape = 'f32[8,128]{1,0:T(8,128)}', space=vmem, size = 0x1000, scoped, tag = 'scratch operand']
  %s0 = inlined_call_operand.vmem [shape: bf16[128,128], index: 0, kind: input, shape index: {}]
  %s1 = inlined_call_operand.vmem [shape: s32[128,1], index: 1, kind: input, shape index: {}]
  %s2 = inlined_call_operand.vmem [shape: bf16[128,128], index: 2, kind: input, shape index: {}]
  %s3 = inlined_call_operand.vmem [shape: f32[1,128], index: 3, kind: input, shape index: {}]
  %s4 = inlined_call_operand.vmem [shape: bf16[128,128], index: 4, kind: input, shape index: {}]
  %s5 = inlined_call_operand.vmem [shape: f32[1,128], index: 5, kind: input, shape index: {}]
  %s6 = inlined_call_operand.vmem [shape: f32[8,128], index: 6, kind: output, shape index: {}]
  %s7 = sld [smem:[#allocation0]]
  $region49: #{gin_forward.7} parent=0
    _
  %s9 = ssub.s32 1, %s7
  %s10 = scalar_select 0, %s9, %s7
  // Predicated region
  $region2: #{gin_forward.7} parent=0 // pred_check
    _
  $region3: #{gin_forward.7} parent=0 // pred_check_branch
    %12 = sbr.rel (0) target = $region5
  $region4: #{gin_forward.7} parent=0 // pred_region
    _
  $region5: #{gin_forward.7} parent=0 // pred_fallthru
    _
  // Predicated region
  $region6: #{gin_forward.7} parent=0 // pred_check
    _
  $region7: #{gin_forward.7} parent=0 // pred_check_branch
    %14 = sbr.rel (0) target = $region9
  $region8: #{gin_forward.7} parent=0 // pred_region
    _
  $region9: #{gin_forward.7} parent=0 // pred_fallthru
    _
  // Predicated region
  $region10: #{gin_forward.7} parent=0 // pred_check
    _
  $region11: #{gin_forward.7} parent=0 // pred_check_branch
    %16 = sbr.rel (0) target = $region13
  $region12: #{gin_forward.7} parent=0 // pred_region
    _
  $region13: #{gin_forward.7} parent=0 // pred_fallthru
    _
  // Predicated region
  $region14: #{gin_forward.7} parent=0 // pred_check
    _
  $region15: #{gin_forward.7} parent=0 // pred_check_branch
    %18 = sbr.rel (0) target = $region17
  $region16: #{gin_forward.7} parent=0 // pred_region
    _
  $region17: #{gin_forward.7} parent=0 // pred_fallthru
    _
  // Predicated region
  $region18: #{gin_forward.7} parent=0 // pred_check
    _
  $region19: #{gin_forward.7} parent=0 // pred_check_branch
    %20 = sbr.rel (0) target = $region21
  $region20: #{gin_forward.7} parent=0 // pred_region
    _
  $region21: #{gin_forward.7} parent=0 // pred_fallthru
    _
  // Predicated region
  $region22: #{gin_forward.7} parent=0 // pred_check
    _
  $region23: #{gin_forward.7} parent=0 // pred_check_branch
    %22 = sbr.rel (0) target = $region25
  $region24: #{gin_forward.7} parent=0 // pred_region
    _
  $region25: #{gin_forward.7} parent=0 // pred_fallthru
    _
  %p24 = scmp.eq.s32.totalorder 0, 0
  // Predicated region
  $region26: #{gin_forward.7} parent=0 // pred_check
    %p25 = pneg %p24
  $region27: #{gin_forward.7} parent=0 // pred_check_branch
    %27 = sbr.rel (%p25) target = $region29
  $region28: #{gin_forward.7} parent=0 // pred_region
    %28 = vst [vmem:[#allocation2] sm:$0xff] -3.4028235e+38
  $region29: #{gin_forward.7} parent=0 // pred_fallthru
    _
  %v29 = vld [vmem:[%s0] sm:$0xf]
  %v30 = vld [vmem:[%s0 + $0x4] sm:$0xf]
  %v31 = vld [vmem:[%s0 + $0x8] sm:$0xf]
  %v32 = vld [vmem:[%s0 + $0xc] sm:$0xf]
  %v33 = vld [vmem:[%s0 + $0x10] sm:$0xf]
  %v34 = vld [vmem:[%s0 + $0x14] sm:$0xf]
  %v35 = vld [vmem:[%s0 + $0x18] sm:$0xf]
  %v36 = vld [vmem:[%s0 + $0x1c] sm:$0xf]
  %v37 = vld [vmem:[%s0 + $0x20] sm:$0xf]
  %v38 = vld [vmem:[%s0 + $0x24] sm:$0xf]
  %v39 = vld [vmem:[%s0 + $0x28] sm:$0xf]
  %v40 = vld [vmem:[%s0 + $0x2c] sm:$0xf]
  %v41 = vld [vmem:[%s0 + $0x30] sm:$0xf]
  %v42 = vld [vmem:[%s0 + $0x34] sm:$0xf]
  %v43 = vld [vmem:[%s0 + $0x38] sm:$0xf]
  %v44 = vld [vmem:[%s0 + $0x3c] sm:$0xf]
  %v45 = vunpack.c.l.bf16 %v29
  %v46 = vunpack.c.l.bf16 %v30
  %v47 = vunpack.c.l.bf16 %v31
  %v48 = vunpack.c.l.bf16 %v32
  %v49 = vunpack.c.l.bf16 %v33
  %v50 = vunpack.c.l.bf16 %v34
  %v51 = vunpack.c.l.bf16 %v35
  %v52 = vunpack.c.l.bf16 %v36
  %v53 = vunpack.c.l.bf16 %v37
  %v54 = vunpack.c.l.bf16 %v38
  %v55 = vunpack.c.l.bf16 %v39
  %v56 = vunpack.c.l.bf16 %v40
  %v57 = vunpack.c.l.bf16 %v41
  %v58 = vunpack.c.l.bf16 %v42
  %v59 = vunpack.c.l.bf16 %v43
  %v60 = vunpack.c.l.bf16 %v44
  %v61 = vld [vmem:[%s1] sm:$0xff]
  %v62 = vld [vmem:[%s1 + $0x8] sm:$0xff]
  %v63 = vld [vmem:[%s1 + $0x10] sm:$0xff]
  %v64 = vld [vmem:[%s1 + $0x18] sm:$0xff]
  %v65 = vld [vmem:[%s1 + $0x20] sm:$0xff]
  %v66 = vld [vmem:[%s1 + $0x28] sm:$0xff]
  %v67 = vld [vmem:[%s1 + $0x30] sm:$0xff]
  %v68 = vld [vmem:[%s1 + $0x38] sm:$0xff]
  %v69 = vld [vmem:[%s1 + $0x40] sm:$0xff]
  %v70 = vld [vmem:[%s1 + $0x48] sm:$0xff]
  %v71 = vld [vmem:[%s1 + $0x50] sm:$0xff]
  %v72 = vld [vmem:[%s1 + $0x58] sm:$0xff]
  %v73 = vld [vmem:[%s1 + $0x60] sm:$0xff]
  %v74 = vld [vmem:[%s1 + $0x68] sm:$0xff]
  %v75 = vld [vmem:[%s1 + $0x70] sm:$0xff]
  %v76 = vld [vmem:[%s1 + $0x78] sm:$0xff]
  %v77 = vlaneseq
  %v78 = vshrl.u32 %v77, 7
  %v79 = vld [vmem:[#allocation2] sm:$0xff]
  loop: start=0, step=1, limit=8
  $region30: #{gin_forward.7} parent=0 // loop_pre_header
    _
  $region31: #{gin_forward.7} parent=0 // loop_header
    %s81 = sphi 0, %s85
    %p82 = scmp.ge.s32.totalorder %s81, 8
    %v86 = vphi %v79, %v223
  $region32: #{gin_forward.7} parent=0 // loop_header_branch
    %84 = sbr.rel (%p82) target = $region36
  $region33: #{gin_forward.7} parent=0 // loop_body
    %v87 = vstv %s81
    %vm88 = vcmp.eq.s32.totalorder %v61, %v87
    %vm89 = vcmp.eq.s32.totalorder %v62, %v87
    %vm90 = vcmp.eq.s32.totalorder %v63, %v87
    %vm91 = vcmp.eq.s32.totalorder %v64, %v87
    %vm92 = vcmp.eq.s32.totalorder %v65, %v87
    %vm93 = vcmp.eq.s32.totalorder %v66, %v87
    %vm94 = vcmp.eq.s32.totalorder %v67, %v87
    %vm95 = vcmp.eq.s32.totalorder %v68, %v87
    %vm96 = vcmp.eq.s32.totalorder %v69, %v87
    %vm97 = vcmp.eq.s32.totalorder %v70, %v87
    %vm98 = vcmp.eq.s32.totalorder %v71, %v87
    %vm99 = vcmp.eq.s32.totalorder %v72, %v87
    %vm100 = vcmp.eq.s32.totalorder %v73, %v87
    %vm101 = vcmp.eq.s32.totalorder %v74, %v87
    %vm102 = vcmp.eq.s32.totalorder %v75, %v87
    %vm103 = vcmp.eq.s32.totalorder %v76, %v87
    %v104 = vsel %vm88, 1, 0
    %v105 = vsel %vm89, 1, 0
    %v106 = vsel %vm90, 1, 0
    %v107 = vsel %vm91, 1, 0
    %v108 = vsel %vm92, 1, 0
    %v109 = vsel %vm93, 1, 0
    %v110 = vsel %vm94, 1, 0
    %v111 = vsel %vm95, 1, 0
    %v112 = vsel %vm96, 1, 0
    %v113 = vsel %vm97, 1, 0
    %v114 = vsel %vm98, 1, 0
    %v115 = vsel %vm99, 1, 0
    %v116 = vsel %vm100, 1, 0
    %v117 = vsel %vm101, 1, 0
    %v118 = vsel %vm102, 1, 0
    %v119 = vsel %vm103, 1, 0
    %120 = vset.pattern.permute.xlu0 0
    %121 = vperm.xlu0 %120, %v104
    %v122 = vpop.permute.xlu0 %121
    %123 = vset.pattern.permute.xlu0 0
    %124 = vperm.xlu0 %123, %v105
    %v125 = vpop.permute.xlu0 %124
    %126 = vset.pattern.permute.xlu0 0
    %127 = vperm.xlu0 %126, %v106
    %v128 = vpop.permute.xlu0 %127
    %129 = vset.pattern.permute.xlu0 0
    %130 = vperm.xlu0 %129, %v107
    %v131 = vpop.permute.xlu0 %130
    %132 = vset.pattern.permute.xlu0 0
    %133 = vperm.xlu0 %132, %v108
    %v134 = vpop.permute.xlu0 %133
    %135 = vset.pattern.permute.xlu0 0
    %136 = vperm.xlu0 %135, %v109
    %v137 = vpop.permute.xlu0 %136
    %138 = vset.pattern.permute.xlu0 0
    %139 = vperm.xlu0 %138, %v110
    %v140 = vpop.permute.xlu0 %139
    %141 = vset.pattern.permute.xlu0 0
    %142 = vperm.xlu0 %141, %v111
    %v143 = vpop.permute.xlu0 %142
    %144 = vset.pattern.permute.xlu0 0
    %145 = vperm.xlu0 %144, %v112
    %v146 = vpop.permute.xlu0 %145
    %147 = vset.pattern.permute.xlu0 0
    %148 = vperm.xlu0 %147, %v113
    %v149 = vpop.permute.xlu0 %148
    %150 = vset.pattern.permute.xlu0 0
    %151 = vperm.xlu0 %150, %v114
    %v152 = vpop.permute.xlu0 %151
    %153 = vset.pattern.permute.xlu0 0
    %154 = vperm.xlu0 %153, %v115
    %v155 = vpop.permute.xlu0 %154
    %156 = vset.pattern.permute.xlu0 0
    %157 = vperm.xlu0 %156, %v116
    %v158 = vpop.permute.xlu0 %157
    %159 = vset.pattern.permute.xlu0 0
    %160 = vperm.xlu0 %159, %v117
    %v161 = vpop.permute.xlu0 %160
    %162 = vset.pattern.permute.xlu0 0
    %163 = vperm.xlu0 %162, %v118
    %v164 = vpop.permute.xlu0 %163
    %165 = vset.pattern.permute.xlu0 0
    %166 = vperm.xlu0 %165, %v119
    %v167 = vpop.permute.xlu0 %166
    %vm168 = vcmp.eq.s32.totalorder %v122, 1
    %vm169 = vcmp.eq.s32.totalorder %v125, 1
    %vm170 = vcmp.eq.s32.totalorder %v128, 1
    %vm171 = vcmp.eq.s32.totalorder %v131, 1
    %vm172 = vcmp.eq.s32.totalorder %v134, 1
    %vm173 = vcmp.eq.s32.totalorder %v137, 1
    %vm174 = vcmp.eq.s32.totalorder %v140, 1
    %vm175 = vcmp.eq.s32.totalorder %v143, 1
    %vm176 = vcmp.eq.s32.totalorder %v146, 1
    %vm177 = vcmp.eq.s32.totalorder %v149, 1
    %vm178 = vcmp.eq.s32.totalorder %v152, 1
    %vm179 = vcmp.eq.s32.totalorder %v155, 1
    %vm180 = vcmp.eq.s32.totalorder %v158, 1
    %vm181 = vcmp.eq.s32.totalorder %v161, 1
    %vm182 = vcmp.eq.s32.totalorder %v164, 1
    %vm183 = vcmp.eq.s32.totalorder %v167, 1
    %v184 = vsel %vm168, %v45, -3.4028235e+38
    %v185 = vsel %vm169, %v46, -3.4028235e+38
    %v186 = vsel %vm170, %v47, -3.4028235e+38
    %v187 = vsel %vm171, %v48, -3.4028235e+38
    %v188 = vsel %vm172, %v49, -3.4028235e+38
    %v189 = vsel %vm173, %v50, -3.4028235e+38
    %v190 = vsel %vm174, %v51, -3.4028235e+38
    %v191 = vsel %vm175, %v52, -3.4028235e+38
    %v192 = vsel %vm176, %v53, -3.4028235e+38
    %v193 = vsel %vm177, %v54, -3.4028235e+38
    %v194 = vsel %vm178, %v55, -3.4028235e+38
    %v195 = vsel %vm179, %v56, -3.4028235e+38
    %v196 = vsel %vm180, %v57, -3.4028235e+38
    %v197 = vsel %vm181, %v58, -3.4028235e+38
    %v198 = vsel %vm182, %v59, -3.4028235e+38
    %v199 = vsel %vm183, %v60, -3.4028235e+38
    %v200 = vmax.f32 %v184, %v188
    %v201 = vmax.f32 %v185, %v189
    %v202 = vmax.f32 %v186, %v190
    %v203 = vmax.f32 %v187, %v191
    %v204 = vmax.f32 %v200, %v192
    %v205 = vmax.f32 %v201, %v193
    %v206 = vmax.f32 %v202, %v194
    %v207 = vmax.f32 %v203, %v195
    %v208 = vmax.f32 %v204, %v196
    %v209 = vmax.f32 %v205, %v197
    %v210 = vmax.f32 %v206, %v198
    %v211 = vmax.f32 %v207, %v199
    %v212 = vmax.f32 %v208, %v209
    %v213 = vmax.f32 %v210, %v211
    %v214 = vmax.f32 %v212, %v213
    %v215 = vrot.slane %v214, 4
    %v216 = vmax.f32 %v214, %v215
    %v217 = vrot.slane %v216, 2
    %v218 = vmax.f32 %v216, %v217
    %v219 = vrot.slane %v218, 1
    %v220 = vmax.f32 %v218, %v219
    %v221 = vmax.f32 %v86, %v220
    %vm222 = vcmp.eq.s32.totalorder %v78, %v87
    %v223 = vsel %vm222, %v221, %v86
  $region34: #{gin_forward.7} parent=0 // loop_footer
    %s85 = sadd.s32 1, %s81
  $region35: #{gin_forward.7} parent=0 // loop_footer_branch
    %80 = sbr.rel target = $region31
  $region36: #{gin_forward.7} parent=0 // loop_exit
    _
  %224 = vst [vmem:[#allocation2] sm:$0xff] %v86
  // Predicated region
  $region37: #{gin_forward.7} parent=0 // pred_check
    %p225 = pneg %p24
  $region38: #{gin_forward.7} parent=0 // pred_check_branch
    %227 = sbr.rel (%p225) target = $region40
  $region39: #{gin_forward.7} parent=0 // pred_region
    %v228 = vld [vmem:[#allocation2] sm:$0xff]
    %v229 = vpack.c.bf16 %v228, %v228
    %v230 = vld [vmem:[%s2] sm:$0xf]
    %v231 = vld [vmem:[%s2 + $0x4] sm:$0xf]
    %v232 = vld [vmem:[%s2 + $0x8] sm:$0xf]
    %v233 = vld [vmem:[%s2 + $0xc] sm:$0xf]
    %v234 = vld [vmem:[%s2 + $0x10] sm:$0xf]
    %v235 = vld [vmem:[%s2 + $0x14] sm:$0xf]
    %v236 = vld [vmem:[%s2 + $0x18] sm:$0xf]
    %v237 = vld [vmem:[%s2 + $0x1c] sm:$0xf]
    %v238 = vld [vmem:[%s2 + $0x20] sm:$0xf]
    %v239 = vld [vmem:[%s2 + $0x24] sm:$0xf]
    %v240 = vld [vmem:[%s2 + $0x28] sm:$0xf]
    %v241 = vld [vmem:[%s2 + $0x2c] sm:$0xf]
    %v242 = vld [vmem:[%s2 + $0x30] sm:$0xf]
    %v243 = vld [vmem:[%s2 + $0x34] sm:$0xf]
    %v244 = vld [vmem:[%s2 + $0x38] sm:$0xf]
    %v245 = vld [vmem:[%s2 + $0x3c] sm:$0xf]
    %v246 = vld [vmem:[%s3] sm:$0x1]
    %v248 = vlaneseq
    %v249 = vshrl.u32 %v248, 7
    %v250 = vsub.s32 0, %v249
    %v251 = vrot.slane %v246, %v250
    %v269 = vunpack.c.l.b16 %v230
    %v270 = vunpack.c.l.b16 %v231
    %v271 = vunpack.c.l.b16 %v232
    %v272 = vunpack.c.l.b16 %v233
    %v273 = vunpack.c.l.b16 %v234
    %v274 = vunpack.c.l.b16 %v235
    %v275 = vunpack.c.l.b16 %v236
    %v276 = vunpack.c.l.b16 %v237
    %v277 = vunpack.c.l.b16 %v238
    %v278 = vunpack.c.l.b16 %v239
    %v279 = vunpack.c.l.b16 %v240
    %v280 = vunpack.c.l.b16 %v241
    %v281 = vunpack.c.l.b16 %v242
    %v282 = vunpack.c.l.b16 %v243
    %v283 = vunpack.c.l.b16 %v244
    %v284 = vunpack.c.l.b16 %v245
    %v285 = vpack.c.b16 %v270, %v269
    %v286 = vpack.c.b16 %v272, %v271
    %v287 = vpack.c.b16 %v274, %v273
    %v288 = vpack.c.b16 %v276, %v275
    %v289 = vpack.c.b16 %v278, %v277
    %v290 = vpack.c.b16 %v280, %v279
    %v291 = vpack.c.b16 %v282, %v281
    %v292 = vpack.c.b16 %v284, %v283
    %301 = vmatprep.subr.bf16.mxu0 0
    %302 = vmatpush1.bf16.msra.mxu0 %v285
    %303 = vmatprep.subr.bf16.mxu0 0
    %304 = vmatpush1.bf16.msra.mxu0 %v286
    %305 = vmatprep.subr.bf16.mxu0 0
    %306 = vmatpush1.bf16.msra.mxu0 %v287
    %307 = vmatprep.subr.bf16.mxu0 0
    %308 = vmatpush1.bf16.msra.mxu0 %v288
    %309 = vmatprep.subr.bf16.mxu0 0
    %310 = vmatpush1.bf16.msra.mxu0 %v289
    %311 = vmatprep.subr.bf16.mxu0 0
    %312 = vmatpush1.bf16.msra.mxu0 %v290
    %313 = vmatprep.subr.bf16.mxu0 0
    %314 = vmatpush1.bf16.msra.mxu0 %v291
    %315 = vmatprep.subr.bf16.mxu0 0
    %316 = vmatpush1.bf16.msra.mxu0 %v292
    %317 = vmatprep.subr.bf16.mxu0 0
    %318 = vmatpush1.bf16.msra.mxu0 0
    %319 = vmatprep.subr.bf16.mxu0 0
    %320 = vmatpush1.bf16.msra.mxu0 0
    %321 = vmatprep.subr.bf16.mxu0 0
    %322 = vmatpush1.bf16.msra.mxu0 0
    %323 = vmatprep.subr.bf16.mxu0 0
    %324 = vmatpush1.bf16.msra.mxu0 0
    %325 = vmatprep.subr.bf16.mxu0 0
    %326 = vmatpush1.bf16.msra.mxu0 0
    %327 = vmatprep.subr.bf16.mxu0 0
    %328 = vmatpush1.bf16.msra.mxu0 0
    %329 = vmatprep.subr.bf16.mxu0 0
    %330 = vmatpush1.bf16.msra.mxu0 0
    %331 = vmatprep.subr.bf16.mxu0 0
    %332 = vmatpush1.bf16.msra.mxu0 0
    %333 = vmatprep.mubr.bf16.mxu0 0
    %334 = vmatmul.mubr.bf16.gmra.mrb[0].mxu0 %v229
    %v335 = vpop.f32.mrb[0].mxu0
    %v336 = vadd.f32 %v251, %v335
    %v337 = vpop.f32.mrb[0].mxu0
    %v338 = vpop.f32.mrb[0].mxu0
    %v339 = vpop.f32.mrb[0].mxu0
    %340 = vdwg.mxu0
    %v341 = vmax.f32 %v336, 0.0
    %v342 = vpack.c.bf16 %v341, %v341
    %v343 = vld [vmem:[%s4] sm:$0xf]
    %v344 = vld [vmem:[%s4 + $0x4] sm:$0xf]
    %v345 = vld [vmem:[%s4 + $0x8] sm:$0xf]
    %v346 = vld [vmem:[%s4 + $0xc] sm:$0xf]
    %v347 = vld [vmem:[%s4 + $0x10] sm:$0xf]
    %v348 = vld [vmem:[%s4 + $0x14] sm:$0xf]
    %v349 = vld [vmem:[%s4 + $0x18] sm:$0xf]
    %v350 = vld [vmem:[%s4 + $0x1c] sm:$0xf]
    %v351 = vld [vmem:[%s4 + $0x20] sm:$0xf]
    %v352 = vld [vmem:[%s4 + $0x24] sm:$0xf]
    %v353 = vld [vmem:[%s4 + $0x28] sm:$0xf]
    %v354 = vld [vmem:[%s4 + $0x2c] sm:$0xf]
    %v355 = vld [vmem:[%s4 + $0x30] sm:$0xf]
    %v356 = vld [vmem:[%s4 + $0x34] sm:$0xf]
    %v357 = vld [vmem:[%s4 + $0x38] sm:$0xf]
    %v358 = vld [vmem:[%s4 + $0x3c] sm:$0xf]
    %v359 = vld [vmem:[%s5] sm:$0x1]
    %v361 = vlaneseq
    %v362 = vshrl.u32 %v361, 7
    %v363 = vsub.s32 0, %v362
    %v364 = vrot.slane %v359, %v363
    %v382 = vunpack.c.l.b16 %v343
    %v383 = vunpack.c.l.b16 %v344
    %v384 = vunpack.c.l.b16 %v345
    %v385 = vunpack.c.l.b16 %v346
    %v386 = vunpack.c.l.b16 %v347
    %v387 = vunpack.c.l.b16 %v348
    %v388 = vunpack.c.l.b16 %v349
    %v389 = vunpack.c.l.b16 %v350
    %v390 = vunpack.c.l.b16 %v351
    %v391 = vunpack.c.l.b16 %v352
    %v392 = vunpack.c.l.b16 %v353
    %v393 = vunpack.c.l.b16 %v354
    %v394 = vunpack.c.l.b16 %v355
    %v395 = vunpack.c.l.b16 %v356
    %v396 = vunpack.c.l.b16 %v357
    %v397 = vunpack.c.l.b16 %v358
    %v398 = vpack.c.b16 %v383, %v382
    %v399 = vpack.c.b16 %v385, %v384
    %v400 = vpack.c.b16 %v387, %v386
    %v401 = vpack.c.b16 %v389, %v388
    %v402 = vpack.c.b16 %v391, %v390
    %v403 = vpack.c.b16 %v393, %v392
    %v404 = vpack.c.b16 %v395, %v394
    %v405 = vpack.c.b16 %v397, %v396
    %414 = vmatprep.subr.bf16.mxu0 0
    %415 = vmatpush1.bf16.msra.mxu0 %v398
    %416 = vmatprep.subr.bf16.mxu0 0
    %417 = vmatpush1.bf16.msra.mxu0 %v399
    %418 = vmatprep.subr.bf16.mxu0 0
    %419 = vmatpush1.bf16.msra.mxu0 %v400
    %420 = vmatprep.subr.bf16.mxu0 0
    %421 = vmatpush1.bf16.msra.mxu0 %v401
    %422 = vmatprep.subr.bf16.mxu0 0
    %423 = vmatpush1.bf16.msra.mxu0 %v402
    %424 = vmatprep.subr.bf16.mxu0 0
    %425 = vmatpush1.bf16.msra.mxu0 %v403
    %426 = vmatprep.subr.bf16.mxu0 0
    %427 = vmatpush1.bf16.msra.mxu0 %v404
    %428 = vmatprep.subr.bf16.mxu0 0
    %429 = vmatpush1.bf16.msra.mxu0 %v405
    %430 = vmatprep.subr.bf16.mxu0 0
    %431 = vmatpush1.bf16.msra.mxu0 0
    %432 = vmatprep.subr.bf16.mxu0 0
    %433 = vmatpush1.bf16.msra.mxu0 0
    %434 = vmatprep.subr.bf16.mxu0 0
    %435 = vmatpush1.bf16.msra.mxu0 0
    %436 = vmatprep.subr.bf16.mxu0 0
    %437 = vmatpush1.bf16.msra.mxu0 0
    %438 = vmatprep.subr.bf16.mxu0 0
    %439 = vmatpush1.bf16.msra.mxu0 0
    %440 = vmatprep.subr.bf16.mxu0 0
    %441 = vmatpush1.bf16.msra.mxu0 0
    %442 = vmatprep.subr.bf16.mxu0 0
    %443 = vmatpush1.bf16.msra.mxu0 0
    %444 = vmatprep.subr.bf16.mxu0 0
    %445 = vmatpush1.bf16.msra.mxu0 0
    %446 = vmatprep.mubr.bf16.mxu0 0
    %447 = vmatmul.mubr.bf16.gmra.mrb[0].mxu0 %v342
    %v448 = vpop.f32.mrb[0].mxu0
    %v449 = vadd.f32 %v364, %v448
    %v450 = vpop.f32.mrb[0].mxu0
    %v451 = vpop.f32.mrb[0].mxu0
    %v452 = vpop.f32.mrb[0].mxu0
    %453 = vdwg.mxu0
    %454 = vst [vmem:[%s6] sm:$0xff] %v449
  $region40: #{gin_forward.7} parent=0 // pred_fallthru
    _
  // Predicated region
  $region41: #{gin_forward.7} parent=0 // pred_check
    _
  $region42: #{gin_forward.7} parent=0 // pred_check_branch
    %456 = sbr.rel (0) target = $region44
  $region43: #{gin_forward.7} parent=0 // pred_region
    _
  $region44: #{gin_forward.7} parent=0 // pred_fallthru
    _
  // Predicated region
  $region45: #{gin_forward.7} parent=0 // pred_check
    _
  $region46: #{gin_forward.7} parent=0 // pred_check_branch
    %458 = sbr.rel (0) target = $region48
  $region47: #{gin_forward.7} parent=0 // pred_region
    _
  $region48: #{gin_forward.7} parent=0 // pred_fallthru
    _

// kernel: gin_forward.4
$region0: #{gin_forward.4}
  #allocation0 [shape = 'u32[]', space=smem, size = 0x4, offset = 0x4, fixed_abs, tag = 'smem constant byte address 0x4 - core index']
  #allocation1 [shape = 'u32[144,128]{1,0:T(1,128)}', space=vmem, size = 0x12000, scoped, tag = 'internal scratch']
  #allocation2 [shape = 'f32[128,128]{1,0:T(8,128)}', space=vmem, size = 0x10000, scoped, tag = 'scratch operand']
  #allocation3 [shape = 's32[1]{0}', space=sflag, size = 0x4, scoped, tag = 'scoped memory for gin_forward.4']
  #allocation4 [shape = 's32[1]{0:T(128)S(6)}', space=smem, size = 0x200, scoped, tag = 'prefetched SMEM operand 0']
  #allocation5 [shape = 's32[1]{0:T(128)S(6)}', space=smem, size = 0x200, scoped, tag = 'prefetched SMEM operand 1']
  %s0 = inlined_call_operand.<no memory space> [shape: s32[1], index: 0, kind: input, shape index: {}]
  %s1 = inlined_call_operand.<no memory space> [shape: s32[1], index: 1, kind: input, shape index: {}]
  %s2 = inlined_call_operand.vmem [shape: s8[128,128], index: 2, kind: input, shape index: {}]
  %s3 = inlined_call_operand.vmem [shape: bf16[128,128], index: 3, kind: input, shape index: {}]
  %s4 = inlined_call_operand.vmem [shape: bf16[128,128], index: 4, kind: input, shape index: {}]
  %s5 = inlined_call_operand.vmem [shape: f32[1,128], index: 5, kind: input, shape index: {}]
  %s6 = inlined_call_operand.vmem [shape: bf16[128,128], index: 6, kind: input, shape index: {}]
  %s7 = inlined_call_operand.vmem [shape: f32[1,128], index: 7, kind: input, shape index: {}]
  %s8 = inlined_call_operand.vmem [shape: bf16[128,128], index: 8, kind: output, shape index: {}]
  %s9 = sld [smem:[#allocation0]]
  $region46: #{gin_forward.4} parent=0
    _
  %s11 = ssub.s32 1, %s9
  %s12 = scalar_select 0, %s11, %s9
  %13 = sst [smem:[#allocation4]] %s0
  %14 = sst [smem:[#allocation5]] %s1
  // Predicated region
  $region2: #{gin_forward.4} parent=0 // pred_check
    _
  $region3: #{gin_forward.4} parent=0 // pred_check_branch
    %16 = sbr.rel (0) target = $region5
  $region4: #{gin_forward.4} parent=0 // pred_region
    %s17 = sadd.s32 0, 0
    %s18 = sld [smem:[#allocation5 + %s17]]
    %p19 = scmp.lt.s32.totalorder %s18, 0
    %s20 = scalar_select %p19, %s18, 0
    %s21 = smul.addr %s20, 2
    %s22 = scalar_lea.vmem %s2, %s21
    %s23 = sadd.s32 0, 0
    %s24 = sld [smem:[#allocation5 + %s23]]
  $region5: #{gin_forward.4} parent=0 // pred_fallthru
    _
  // Predicated region
  $region6: #{gin_forward.4} parent=0 // pred_check
    _
  $region7: #{gin_forward.4} parent=0 // pred_check_branch
    %26 = sbr.rel (0) target = $region9
  $region8: #{gin_forward.4} parent=0 // pred_region
    _
  $region9: #{gin_forward.4} parent=0 // pred_fallthru
    _
  // Predicated region
  $region10: #{gin_forward.4} parent=0 // pred_check
    _
  $region11: #{gin_forward.4} parent=0 // pred_check_branch
    %28 = sbr.rel (0) target = $region13
  $region12: #{gin_forward.4} parent=0 // pred_region
    _
  $region13: #{gin_forward.4} parent=0 // pred_fallthru
    _
  // Predicated region
  $region14: #{gin_forward.4} parent=0 // pred_check
    _
  $region15: #{gin_forward.4} parent=0 // pred_check_branch
    %30 = sbr.rel (0) target = $region17
  $region16: #{gin_forward.4} parent=0 // pred_region
    _
  $region17: #{gin_forward.4} parent=0 // pred_fallthru
    _
  // Predicated region
  $region18: #{gin_forward.4} parent=0 // pred_check
    _
  $region19: #{gin_forward.4} parent=0 // pred_check_branch
    %32 = sbr.rel (0) target = $region21
  $region20: #{gin_forward.4} parent=0 // pred_region
    _
  $region21: #{gin_forward.4} parent=0 // pred_fallthru
    _
  // Predicated region
  $region22: #{gin_forward.4} parent=0 // pred_check
    _
  $region23: #{gin_forward.4} parent=0 // pred_check_branch
    %34 = sbr.rel (0) target = $region25
  $region24: #{gin_forward.4} parent=0 // pred_region
    _
  $region25: #{gin_forward.4} parent=0 // pred_fallthru
    _
  %s35 = sadd.s32 0, 0
  %s36 = sld [smem:[#allocation5 + %s35]]
  %p37 = scmp.lt.s32.totalorder %s36, 0
  %s38 = scalar_select %p37, %s36, 0
  %s39 = smul.addr %s38, 2
  %s40 = scalar_lea.vmem %s2, %s39
  %s41 = sadd.s32 0, 0
  %s42 = sld [smem:[#allocation5 + %s41]]
  %p43 = scmp.lt.s32.totalorder %s42, 0
  %s44 = scalar_select %p43, %s42, 0
  %s45 = smul.addr %s44, 2
  %s46 = scalar_lea.vmem %s2, %s45
  %s47 = sadd.s32 0, 0
  %s48 = sld [smem:[#allocation5 + %s47]]
  %p50 = scmp.eq.s32.totalorder 0, 0
  // Predicated region
  $region26: #{gin_forward.4} parent=0 // pred_check
    %p51 = pneg %p50
  $region27: #{gin_forward.4} parent=0 // pred_check_branch
    %53 = sbr.rel (%p51) target = $region29
  $region28: #{gin_forward.4} parent=0 // pred_region
    %54 = vst [vmem:[#allocation2] sm:$0xff] 0.0
    %55 = vst [vmem:[#allocation2 + $0x8] sm:$0xff] 0.0
    %56 = vst [vmem:[#allocation2 + $0x10] sm:$0xff] 0.0
    %57 = vst [vmem:[#allocation2 + $0x18] sm:$0xff] 0.0
    %58 = vst [vmem:[#allocation2 + $0x20] sm:$0xff] 0.0
    %59 = vst [vmem:[#allocation2 + $0x28] sm:$0xff] 0.0
    %60 = vst [vmem:[#allocation2 + $0x30] sm:$0xff] 0.0
    %61 = vst [vmem:[#allocation2 + $0x38] sm:$0xff] 0.0
    %62 = vst [vmem:[#allocation2 + $0x40] sm:$0xff] 0.0
    %63 = vst [vmem:[#allocation2 + $0x48] sm:$0xff] 0.0
    %64 = vst [vmem:[#allocation2 + $0x50] sm:$0xff] 0.0
    %65 = vst [vmem:[#allocation2 + $0x58] sm:$0xff] 0.0
    %66 = vst [vmem:[#allocation2 + $0x60] sm:$0xff] 0.0
    %67 = vst [vmem:[#allocation2 + $0x68] sm:$0xff] 0.0
    %68 = vst [vmem:[#allocation2 + $0x70] sm:$0xff] 0.0
    %69 = vst [vmem:[#allocation2 + $0x78] sm:$0xff] 0.0
  $region29: #{gin_forward.4} parent=0 // pred_fallthru
    _
  %s70 = sadd.s32 0, 0
  %s71 = sld [smem:[#allocation4 + %s70]]
  %p72 = scmp.ne.s32.totalorder %s71, 0
  // Predicated region
  $region30: #{gin_forward.4} parent=0 // pred_check
    %p73 = pneg %p72
  $region31: #{gin_forward.4} parent=0 // pred_check_branch
    %75 = sbr.rel (%p73) target = $region33
  $region32: #{gin_forward.4} parent=0 // pred_region
    %s76 = smul.u32 0, 128
    %s77 = sshra.s32 %s76, 3
    %s78 = sand.u32 %s76, 7
    %s79 = smul.addr %s77, 4
    %s80 = scalar_lea.vmem %s3, %s79
    %v81 = vld [vmem:[%s80] sm:$0xf]
    %v82 = vld [vmem:[%s80 + $0x4] sm:$0xf]
    %v83 = vld [vmem:[%s80 + $0x8] sm:$0xf]
    %v84 = vld [vmem:[%s80 + $0xc] sm:$0xf]
    %v85 = vld [vmem:[%s80 + $0x10] sm:$0xf]
    %v86 = vld [vmem:[%s80 + $0x14] sm:$0xf]
    %v87 = vld [vmem:[%s80 + $0x18] sm:$0xf]
    %v88 = vld [vmem:[%s80 + $0x1c] sm:$0xf]
    %v89 = vld [vmem:[%s80 + $0x20] sm:$0xf]
    %v90 = vld [vmem:[%s80 + $0x24] sm:$0xf]
    %v91 = vld [vmem:[%s80 + $0x28] sm:$0xf]
    %v92 = vld [vmem:[%s80 + $0x2c] sm:$0xf]
    %v93 = vld [vmem:[%s80 + $0x30] sm:$0xf]
    %v94 = vld [vmem:[%s80 + $0x34] sm:$0xf]
    %v95 = vld [vmem:[%s80 + $0x38] sm:$0xf]
    %v96 = vld [vmem:[%s80 + $0x3c] sm:$0xf]
    %v97 = vld [vmem:[#allocation2] sm:$0xff]
    %v98 = vld [vmem:[#allocation2 + $0x8] sm:$0xff]
    %v99 = vld [vmem:[#allocation2 + $0x10] sm:$0xff]
    %v100 = vld [vmem:[#allocation2 + $0x18] sm:$0xff]
    %v101 = vld [vmem:[#allocation2 + $0x20] sm:$0xff]
    %v102 = vld [vmem:[#allocation2 + $0x28] sm:$0xff]
    %v103 = vld [vmem:[#allocation2 + $0x30] sm:$0xff]
    %v104 = vld [vmem:[#allocation2 + $0x38] sm:$0xff]
    %v105 = vld [vmem:[#allocation2 + $0x40] sm:$0xff]
    %v106 = vld [vmem:[#allocation2 + $0x48] sm:$0xff]
    %v107 = vld [vmem:[#allocation2 + $0x50] sm:$0xff]
    %v108 = vld [vmem:[#allocation2 + $0x58] sm:$0xff]
    %v109 = vld [vmem:[#allocation2 + $0x60] sm:$0xff]
    %v110 = vld [vmem:[#allocation2 + $0x68] sm:$0xff]
    %v111 = vld [vmem:[#allocation2 + $0x70] sm:$0xff]
    %v112 = vld [vmem:[#allocation2 + $0x78] sm:$0xff]
    %v113 = vld [vmem:[%s46] sm:$0x3]
    %v114 = vld [vmem:[%s46 + $0x2] sm:$0x3]
    %v115 = vld [vmem:[%s46 + $0x4] sm:$0x3]
    %v116 = vld [vmem:[%s46 + $0x6] sm:$0x3]
    %v117 = vld [vmem:[%s46 + $0x8] sm:$0x3]
    %v118 = vld [vmem:[%s46 + $0xa] sm:$0x3]
    %v119 = vld [vmem:[%s46 + $0xc] sm:$0x3]
    %v120 = vld [vmem:[%s46 + $0xe] sm:$0x3]
    %v121 = vld [vmem:[%s46 + $0x10] sm:$0x3]
    %v122 = vld [vmem:[%s46 + $0x12] sm:$0x3]
    %v123 = vld [vmem:[%s46 + $0x14] sm:$0x3]
    %v124 = vld [vmem:[%s46 + $0x16] sm:$0x3]
    %v125 = vld [vmem:[%s46 + $0x18] sm:$0x3]
    %v126 = vld [vmem:[%s46 + $0x1a] sm:$0x3]
    %v127 = vld [vmem:[%s46 + $0x1c] sm:$0x3]
    %v128 = vld [vmem:[%s46 + $0x1e] sm:$0x3]
    %v129 = vunpack.c.l.s8.bf16 %v113
    %v130 = vunpack.c.l.s8.bf16 %v114
    %v131 = vunpack.c.l.s8.bf16 %v115
    %v132 = vunpack.c.l.s8.bf16 %v116
    %v133 = vunpack.c.l.s8.bf16 %v117
    %v134 = vunpack.c.l.s8.bf16 %v118
    %v135 = vunpack.c.l.s8.bf16 %v119
    %v136 = vunpack.c.l.s8.bf16 %v120
    %v137 = vunpack.c.l.s8.bf16 %v121
    %v138 = vunpack.c.l.s8.bf16 %v122
    %v139 = vunpack.c.l.s8.bf16 %v123
    %v140 = vunpack.c.l.s8.bf16 %v124
    %v141 = vunpack.c.l.s8.bf16 %v125
    %v142 = vunpack.c.l.s8.bf16 %v126
    %v143 = vunpack.c.l.s8.bf16 %v127
    %v144 = vunpack.c.l.s8.bf16 %v128
    %v161 = vunpack.c.l.b16 %v129
    %v162 = vunpack.c.l.b16 %v130
    %v163 = vunpack.c.l.b16 %v131
    %v164 = vunpack.c.l.b16 %v132
    %v165 = vunpack.c.l.b16 %v133
    %v166 = vunpack.c.l.b16 %v134
    %v167 = vunpack.c.l.b16 %v135
    %v168 = vunpack.c.l.b16 %v136
    %v169 = vunpack.c.l.b16 %v137
    %v170 = vunpack.c.l.b16 %v138
    %v171 = vunpack.c.l.b16 %v139
    %v172 = vunpack.c.l.b16 %v140
    %v173 = vunpack.c.l.b16 %v141
    %v174 = vunpack.c.l.b16 %v142
    %v175 = vunpack.c.l.b16 %v143
    %v176 = vunpack.c.l.b16 %v144
    %v177 = vpack.c.b16 %v162, %v161
    %v178 = vpack.c.b16 %v164, %v163
    %v179 = vpack.c.b16 %v166, %v165
    %v180 = vpack.c.b16 %v168, %v167
    %v181 = vpack.c.b16 %v170, %v169
    %v182 = vpack.c.b16 %v172, %v171
    %v183 = vpack.c.b16 %v174, %v173
    %v184 = vpack.c.b16 %v176, %v175
    %v209 = vunpack.c.l.b16 %v81
    %v210 = vunpack.c.l.b16 %v82
    %v211 = vunpack.c.l.b16 %v83
    %v212 = vunpack.c.l.b16 %v84
    %v213 = vunpack.c.l.b16 %v85
    %v214 = vunpack.c.l.b16 %v86
    %v215 = vunpack.c.l.b16 %v87
    %v216 = vunpack.c.l.b16 %v88
    %v217 = vunpack.c.l.b16 %v89
    %v218 = vunpack.c.l.b16 %v90
    %v219 = vunpack.c.l.b16 %v91
    %v220 = vunpack.c.l.b16 %v92
    %v221 = vunpack.c.l.b16 %v93
    %v222 = vunpack.c.l.b16 %v94
    %v223 = vunpack.c.l.b16 %v95
    %v224 = vunpack.c.l.b16 %v96
    %v225 = vpack.c.b16 %v210, %v209
    %v226 = vpack.c.b16 %v212, %v211
    %v227 = vpack.c.b16 %v214, %v213
    %v228 = vpack.c.b16 %v216, %v215
    %v229 = vpack.c.b16 %v218, %v217
    %v230 = vpack.c.b16 %v220, %v219
    %v231 = vpack.c.b16 %v222, %v221
    %v232 = vpack.c.b16 %v224, %v223
    %241 = vmatprep.subr.bf16.mxu0 0
    %242 = vmatpush1.bf16.msra.mxu0 %v225
    %243 = vmatprep.subr.bf16.mxu0 0
    %244 = vmatpush1.bf16.msra.mxu0 %v226
    %245 = vmatprep.subr.bf16.mxu0 0
    %246 = vmatpush1.bf16.msra.mxu0 %v227
    %247 = vmatprep.subr.bf16.mxu0 0
    %248 = vmatpush1.bf16.msra.mxu0 %v228
    %249 = vmatprep.subr.bf16.mxu0 0
    %250 = vmatpush1.bf16.msra.mxu0 %v229
    %251 = vmatprep.subr.bf16.mxu0 0
    %252 = vmatpush1.bf16.msra.mxu0 %v230
    %253 = vmatprep.subr.bf16.mxu0 0
    %254 = vmatpush1.bf16.msra.mxu0 %v231
    %255 = vmatprep.subr.bf16.mxu0 0
    %256 = vmatpush1.bf16.msra.mxu0 %v232
    %257 = vmatprep.subr.bf16.mxu0 0
    %258 = vmatpush1.bf16.msra.mxu0 0
    %259 = vmatprep.subr.bf16.mxu0 0
    %260 = vmatpush1.bf16.msra.mxu0 0
    %261 = vmatprep.subr.bf16.mxu0 0
    %262 = vmatpush1.bf16.msra.mxu0 0
    %263 = vmatprep.subr.bf16.mxu0 0
    %264 = vmatpush1.bf16.msra.mxu0 0
    %265 = vmatprep.subr.bf16.mxu0 0
    %266 = vmatpush1.bf16.msra.mxu0 0
    %267 = vmatprep.subr.bf16.mxu0 0
    %268 = vmatpush1.bf16.msra.mxu0 0
    %269 = vmatprep.subr.bf16.mxu0 0
    %270 = vmatpush1.bf16.msra.mxu0 0
    %271 = vmatprep.subr.bf16.mxu0 0
    %272 = vmatpush1.bf16.msra.mxu0 0
    %273 = vmatprep.mubr.bf16.mxu0 0
    %274 = vmatmul.mubr.bf16.gmra.mrb[0].mxu0 %v177
    %v275 = vpop.f32.mrb[0].mxu0
    %v276 = vadd.f32 0.0, %v275
    %v277 = vpop.f32.mrb[0].mxu0
    %v278 = vpop.f32.mrb[0].mxu0
    %v279 = vadd.f32 0.0, %v278
    %v280 = vpop.f32.mrb[0].mxu0
    %281 = vmatprep.mubr.bf16.mxu0 0
    %282 = vmatmul.mubr.bf16.gmra.mrb[0].mxu0 %v178
    %v283 = vpop.f32.mrb[0].mxu0
    %v284 = vadd.f32 0.0, %v283
    %v285 = vpop.f32.mrb[0].mxu0
    %v286 = vpop.f32.mrb[0].mxu0
    %v287 = vadd.f32 0.0, %v286
    %v288 = vpop.f32.mrb[0].mxu0
    %289 = vmatprep.mubr.bf16.mxu0 0
    %290 = vmatmul.mubr.bf16.gmra.mrb[0].mxu0 %v179
    %v291 = vpop.f32.mrb[0].mxu0
    %v292 = vadd.f32 0.0, %v291
    %v293 = vpop.f32.mrb[0].mxu0
    %v294 = vpop.f32.mrb[0].mxu0
    %v295 = vadd.f32 0.0, %v294
    %v296 = vpop.f32.mrb[0].mxu0
    %297 = vmatprep.mubr.bf16.mxu0 0
    %298 = vmatmul.mubr.bf16.gmra.mrb[0].mxu0 %v180
    %v299 = vpop.f32.mrb[0].mxu0
    %v300 = vadd.f32 0.0, %v299
    %v301 = vpop.f32.mrb[0].mxu0
    %v302 = vpop.f32.mrb[0].mxu0
    %v303 = vadd.f32 0.0, %v302
    %v304 = vpop.f32.mrb[0].mxu0
    %305 = vmatprep.mubr.bf16.mxu0 0
    %306 = vmatmul.mubr.bf16.gmra.mrb[0].mxu0 %v181
    %v307 = vpop.f32.mrb[0].mxu0
    %v308 = vadd.f32 0.0, %v307
    %v309 = vpop.f32.mrb[0].mxu0
    %v310 = vpop.f32.mrb[0].mxu0
    %v311 = vadd.f32 0.0, %v310
    %v312 = vpop.f32.mrb[0].mxu0
    %313 = vmatprep.mubr.bf16.mxu0 0
    %314 = vmatmul.mubr.bf16.gmra.mrb[0].mxu0 %v182
    %v315 = vpop.f32.mrb[0].mxu0
    %v316 = vadd.f32 0.0, %v315
    %v317 = vpop.f32.mrb[0].mxu0
    %v318 = vpop.f32.mrb[0].mxu0
    %v319 = vadd.f32 0.0, %v318
    %v320 = vpop.f32.mrb[0].mxu0
    %321 = vmatprep.mubr.bf16.mxu0 0
    %322 = vmatmul.mubr.bf16.gmra.mrb[0].mxu0 %v183
    %v323 = vpop.f32.mrb[0].mxu0
    %v324 = vadd.f32 0.0, %v323
    %v325 = vpop.f32.mrb[0].mxu0
    %v326 = vpop.f32.mrb[0].mxu0
    %v327 = vadd.f32 0.0, %v326
    %v328 = vpop.f32.mrb[0].mxu0
    %329 = vmatprep.mubr.bf16.mxu0 0
    %330 = vmatmul.mubr.bf16.gmra.mrb[0].mxu0 %v184
    %v331 = vpop.f32.mrb[0].mxu0
    %v332 = vadd.f32 0.0, %v331
    %v333 = vpop.f32.mrb[0].mxu0
    %v334 = vpop.f32.mrb[0].mxu0
    %v335 = vadd.f32 0.0, %v334
    %v336 = vpop.f32.mrb[0].mxu0
    %337 = vdwg.mxu0
    %v338 = vadd.f32 %v97, %v276
    %v339 = vadd.f32 %v98, %v279
    %v340 = vadd.f32 %v99, %v284
    %v341 = vadd.f32 %v100, %v287
    %v342 = vadd.f32 %v101, %v292
    %v343 = vadd.f32 %v102, %v295
    %v344 = vadd.f32 %v103, %v300
    %v345 = vadd.f32 %v104, %v303
    %v346 = vadd.f32 %v105, %v308
    %v347 = vadd.f32 %v106, %v311
    %v348 = vadd.f32 %v107, %v316
    %v349 = vadd.f32 %v108, %v319
    %v350 = vadd.f32 %v109, %v324
    %v351 = vadd.f32 %v110, %v327
    %v352 = vadd.f32 %v111, %v332
    %v353 = vadd.f32 %v112, %v335
    %354 = vst [vmem:[#allocation2] sm:$0xff] %v338
    %355 = vst [vmem:[#allocation2 + $0x8] sm:$0xff] %v339
    %356 = vst [vmem:[#allocation2 + $0x10] sm:$0xff] %v340
    %357 = vst [vmem:[#allocation2 + $0x18] sm:$0xff] %v341
    %358 = vst [vmem:[#allocation2 + $0x20] sm:$0xff] %v342
    %359 = vst [vmem:[#allocation2 + $0x28] sm:$0xff] %v343
    %360 = vst [vmem:[#allocation2 + $0x30] sm:$0xff] %v344
    %361 = vst [vmem:[#allocation2 + $0x38] sm:$0xff] %v345
    %362 = vst [vmem:[#allocation2 + $0x40] sm:$0xff] %v346
    %363 = vst [vmem:[#allocation2 + $0x48] sm:$0xff] %v347
    %364 = vst [vmem:[#allocation2 + $0x50] sm:$0xff] %v348
    %365 = vst [vmem:[#allocation2 + $0x58] sm:$0xff] %v349
    %366 = vst [vmem:[#allocation2 + $0x60] sm:$0xff] %v350
    %367 = vst [vmem:[#allocation2 + $0x68] sm:$0xff] %v351
    %368 = vst [vmem:[#allocation2 + $0x70] sm:$0xff] %v352
    %369 = vst [vmem:[#allocation2 + $0x78] sm:$0xff] %v353
  $region33: #{gin_forward.4} parent=0 // pred_fallthru
    _
  // Predicated region
  $region34: #{gin_forward.4} parent=0 // pred_check
    %p370 = pneg %p50
  $region35: #{gin_forward.4} parent=0 // pred_check_branch
    %372 = sbr.rel (%p370) target = $region37
  $region36: #{gin_forward.4} parent=0 // pred_region
    %s373 = smul.u32 0, 128
    %s374 = sshra.s32 %s373, 3
    %s375 = sand.u32 %s373, 7
    %s376 = smul.addr %s374, 4
    %s377 = scalar_lea.vmem %s3, %s376
    %v378 = vld [vmem:[%s377] sm:$0xf]
    %v379 = vld [vmem:[%s377 + $0x4] sm:$0xf]
    %v380 = vld [vmem:[%s377 + $0x8] sm:$0xf]
    %v381 = vld [vmem:[%s377 + $0xc] sm:$0xf]
    %v382 = vld [vmem:[%s377 + $0x10] sm:$0xf]
    %v383 = vld [vmem:[%s377 + $0x14] sm:$0xf]
    %v384 = vld [vmem:[%s377 + $0x18] sm:$0xf]
    %v385 = vld [vmem:[%s377 + $0x1c] sm:$0xf]
    %v386 = vld [vmem:[%s377 + $0x20] sm:$0xf]
    %v387 = vld [vmem:[%s377 + $0x24] sm:$0xf]
    %v388 = vld [vmem:[%s377 + $0x28] sm:$0xf]
    %v389 = vld [vmem:[%s377 + $0x2c] sm:$0xf]
    %v390 = vld [vmem:[%s377 + $0x30] sm:$0xf]
    %v391 = vld [vmem:[%s377 + $0x34] sm:$0xf]
    %v392 = vld [vmem:[%s377 + $0x38] sm:$0xf]
    %v393 = vld [vmem:[%s377 + $0x3c] sm:$0xf]
    %v394 = vld [vmem:[#allocation2] sm:$0xff]
    %v395 = vld [vmem:[#allocation2 + $0x8] sm:$0xff]
    %v396 = vld [vmem:[#allocation2 + $0x10] sm:$0xff]
    %v397 = vld [vmem:[#allocation2 + $0x18] sm:$0xff]
    %v398 = vld [vmem:[#allocation2 + $0x20] sm:$0xff]
    %v399 = vld [vmem:[#allocation2 + $0x28] sm:$0xff]
    %v400 = vld [vmem:[#allocation2 + $0x30] sm:$0xff]
    %v401 = vld [vmem:[#allocation2 + $0x38] sm:$0xff]
    %v402 = vld [vmem:[#allocation2 + $0x40] sm:$0xff]
    %v403 = vld [vmem:[#allocation2 + $0x48] sm:$0xff]
    %v404 = vld [vmem:[#allocation2 + $0x50] sm:$0xff]
    %v405 = vld [vmem:[#allocation2 + $0x58] sm:$0xff]
    %v406 = vld [vmem:[#allocation2 + $0x60] sm:$0xff]
    %v407 = vld [vmem:[#allocation2 + $0x68] sm:$0xff]
    %v408 = vld [vmem:[#allocation2 + $0x70] sm:$0xff]
    %v409 = vld [vmem:[#allocation2 + $0x78] sm:$0xff]
    %v410 = vunpack.c.l.bf16 %v378
    %v411 = vunpack.c.l.bf16 %v379
    %v412 = vunpack.c.l.bf16 %v380
    %v413 = vunpack.c.l.bf16 %v381
    %v414 = vunpack.c.l.bf16 %v382
    %v415 = vunpack.c.l.bf16 %v383
    %v416 = vunpack.c.l.bf16 %v384
    %v417 = vunpack.c.l.bf16 %v385
    %v418 = vunpack.c.l.bf16 %v386
    %v419 = vunpack.c.l.bf16 %v387
    %v420 = vunpack.c.l.bf16 %v388
    %v421 = vunpack.c.l.bf16 %v389
    %v422 = vunpack.c.l.bf16 %v390
    %v423 = vunpack.c.l.bf16 %v391
    %v424 = vunpack.c.l.bf16 %v392
    %v425 = vunpack.c.l.bf16 %v393
    %v426 = vadd.f32 %v394, %v410
    %v427 = vadd.f32 %v395, %v411
    %v428 = vadd.f32 %v396, %v412
    %v429 = vadd.f32 %v397, %v413
    %v430 = vadd.f32 %v398, %v414
    %v431 = vadd.f32 %v399, %v415
    %v432 = vadd.f32 %v400, %v416
    %v433 = vadd.f32 %v401, %v417
    %v434 = vadd.f32 %v402, %v418
    %v435 = vadd.f32 %v403, %v419
    %v436 = vadd.f32 %v404, %v420
    %v437 = vadd.f32 %v405, %v421
    %v438 = vadd.f32 %v406, %v422
    %v439 = vadd.f32 %v407, %v423
    %v440 = vadd.f32 %v408, %v424
    %v441 = vadd.f32 %v409, %v425
    %v442 = vpack.c.bf16 %v427, %v426
    %v443 = vpack.c.bf16 %v429, %v428
    %v444 = vpack.c.bf16 %v431, %v430
    %v445 = vpack.c.bf16 %v433, %v432
    %v446 = vpack.c.bf16 %v435, %v434
    %v447 = vpack.c.bf16 %v437, %v436
    %v448 = vpack.c.bf16 %v439, %v438
    %v449 = vpack.c.bf16 %v441, %v440
    %v450 = vld [vmem:[%s4] sm:$0xf]
    %v451 = vld [vmem:[%s4 + $0x4] sm:$0xf]
    %v452 = vld [vmem:[%s4 + $0x8] sm:$0xf]
    %v453 = vld [vmem:[%s4 + $0xc] sm:$0xf]
    %v454 = vld [vmem:[%s4 + $0x10] sm:$0xf]
    %v455 = vld [vmem:[%s4 + $0x14] sm:$0xf]
    %v456 = vld [vmem:[%s4 + $0x18] sm:$0xf]
    %v457 = vld [vmem:[%s4 + $0x1c] sm:$0xf]
    %v458 = vld [vmem:[%s4 + $0x20] sm:$0xf]
    %v459 = vld [vmem:[%s4 + $0x24] sm:$0xf]
    %v460 = vld [vmem:[%s4 + $0x28] sm:$0xf]
    %v461 = vld [vmem:[%s4 + $0x2c] sm:$0xf]
    %v462 = vld [vmem:[%s4 + $0x30] sm:$0xf]
    %v463 = vld [vmem:[%s4 + $0x34] sm:$0xf]
    %v464 = vld [vmem:[%s4 + $0x38] sm:$0xf]
    %v465 = vld [vmem:[%s4 + $0x3c] sm:$0xf]
    %v466 = vld [vmem:[%s5] sm:$0x1]
    %v468 = vlaneseq
    %v469 = vshrl.u32 %v468, 7
    %v470 = vsub.s32 0, %v469
    %v471 = vrot.slane %v466, %v470
    %v489 = vunpack.c.l.b16 %v450
    %v490 = vunpack.c.l.b16 %v451
    %v491 = vunpack.c.l.b16 %v452
    %v492 = vunpack.c.l.b16 %v453
    %v493 = vunpack.c.l.b16 %v454
    %v494 = vunpack.c.l.b16 %v455
    %v495 = vunpack.c.l.b16 %v456
    %v496 = vunpack.c.l.b16 %v457
    %v497 = vunpack.c.l.b16 %v458
    %v498 = vunpack.c.l.b16 %v459
    %v499 = vunpack.c.l.b16 %v460
    %v500 = vunpack.c.l.b16 %v461
    %v501 = vunpack.c.l.b16 %v462
    %v502 = vunpack.c.l.b16 %v463
    %v503 = vunpack.c.l.b16 %v464
    %v504 = vunpack.c.l.b16 %v465
    %v505 = vpack.c.b16 %v490, %v489
    %v506 = vpack.c.b16 %v492, %v491
    %v507 = vpack.c.b16 %v494, %v493
    %v508 = vpack.c.b16 %v496, %v495
    %v509 = vpack.c.b16 %v498, %v497
    %v510 = vpack.c.b16 %v500, %v499
    %v511 = vpack.c.b16 %v502, %v501
    %v512 = vpack.c.b16 %v504, %v503
    %521 = vmatprep.subr.bf16.mxu0 0
    %522 = vmatpush1.bf16.msra.mxu0 %v505
    %523 = vmatprep.subr.bf16.mxu0 0
    %524 = vmatpush1.bf16.msra.mxu0 %v506
    %525 = vmatprep.subr.bf16.mxu0 0
    %526 = vmatpush1.bf16.msra.mxu0 %v507
    %527 = vmatprep.subr.bf16.mxu0 0
    %528 = vmatpush1.bf16.msra.mxu0 %v508
    %529 = vmatprep.subr.bf16.mxu0 0
    %530 = vmatpush1.bf16.msra.mxu0 %v509
    %531 = vmatprep.subr.bf16.mxu0 0
    %532 = vmatpush1.bf16.msra.mxu0 %v510
    %533 = vmatprep.subr.bf16.mxu0 0
    %534 = vmatpush1.bf16.msra.mxu0 %v511
    %535 = vmatprep.subr.bf16.mxu0 0
    %536 = vmatpush1.bf16.msra.mxu0 %v512
    %537 = vmatprep.subr.bf16.mxu0 0
    %538 = vmatpush1.bf16.msra.mxu0 0
    %539 = vmatprep.subr.bf16.mxu0 0
    %540 = vmatpush1.bf16.msra.mxu0 0
    %541 = vmatprep.subr.bf16.mxu0 0
    %542 = vmatpush1.bf16.msra.mxu0 0
    %543 = vmatprep.subr.bf16.mxu0 0
    %544 = vmatpush1.bf16.msra.mxu0 0
    %545 = vmatprep.subr.bf16.mxu0 0
    %546 = vmatpush1.bf16.msra.mxu0 0
    %547 = vmatprep.subr.bf16.mxu0 0
    %548 = vmatpush1.bf16.msra.mxu0 0
    %549 = vmatprep.subr.bf16.mxu0 0
    %550 = vmatpush1.bf16.msra.mxu0 0
    %551 = vmatprep.subr.bf16.mxu0 0
    %552 = vmatpush1.bf16.msra.mxu0 0
    %553 = vmatprep.mubr.bf16.mxu0 0
    %554 = vmatmul.mubr.bf16.gmra.mrb[0].mxu0 %v442
    %v555 = vpop.f32.mrb[0].mxu0
    %v556 = vadd.f32 %v471, %v555
    %v557 = vpop.f32.mrb[0].mxu0
    %v558 = vpop.f32.mrb[0].mxu0
    %v559 = vadd.f32 %v471, %v558
    %v560 = vpop.f32.mrb[0].mxu0
    %561 = vmatprep.mubr.bf16.mxu0 0
    %562 = vmatmul.mubr.bf16.gmra.mrb[0].mxu0 %v443
    %v563 = vpop.f32.mrb[0].mxu0
    %v564 = vadd.f32 %v471, %v563
    %v565 = vpop.f32.mrb[0].mxu0
    %v566 = vpop.f32.mrb[0].mxu0
    %v567 = vadd.f32 %v471, %v566
    %v568 = vpop.f32.mrb[0].mxu0
    %569 = vmatprep.mubr.bf16.mxu0 0
    %570 = vmatmul.mubr.bf16.gmra.mrb[0].mxu0 %v444
    %v571 = vpop.f32.mrb[0].mxu0
    %v572 = vadd.f32 %v471, %v571
    %v573 = vpop.f32.mrb[0].mxu0
    %v574 = vpop.f32.mrb[0].mxu0
    %v575 = vadd.f32 %v471, %v574
    %v576 = vpop.f32.mrb[0].mxu0
    %577 = vmatprep.mubr.bf16.mxu0 0
    %578 = vmatmul.mubr.bf16.gmra.mrb[0].mxu0 %v445
    %v579 = vpop.f32.mrb[0].mxu0
    %v580 = vadd.f32 %v471, %v579
    %v581 = vpop.f32.mrb[0].mxu0
    %v582 = vpop.f32.mrb[0].mxu0
    %v583 = vadd.f32 %v471, %v582
    %v584 = vpop.f32.mrb[0].mxu0
    %585 = vmatprep.mubr.bf16.mxu0 0
    %586 = vmatmul.mubr.bf16.gmra.mrb[0].mxu0 %v446
    %v587 = vpop.f32.mrb[0].mxu0
    %v588 = vadd.f32 %v471, %v587
    %v589 = vpop.f32.mrb[0].mxu0
    %v590 = vpop.f32.mrb[0].mxu0
    %v591 = vadd.f32 %v471, %v590
    %v592 = vpop.f32.mrb[0].mxu0
    %593 = vmatprep.mubr.bf16.mxu0 0
    %594 = vmatmul.mubr.bf16.gmra.mrb[0].mxu0 %v447
    %v595 = vpop.f32.mrb[0].mxu0
    %v596 = vadd.f32 %v471, %v595
    %v597 = vpop.f32.mrb[0].mxu0
    %v598 = vpop.f32.mrb[0].mxu0
    %v599 = vadd.f32 %v471, %v598
    %v600 = vpop.f32.mrb[0].mxu0
    %601 = vmatprep.mubr.bf16.mxu0 0
    %602 = vmatmul.mubr.bf16.gmra.mrb[0].mxu0 %v448
    %v603 = vpop.f32.mrb[0].mxu0
    %v604 = vadd.f32 %v471, %v603
    %v605 = vpop.f32.mrb[0].mxu0
    %v606 = vpop.f32.mrb[0].mxu0
    %v607 = vadd.f32 %v471, %v606
    %v608 = vpop.f32.mrb[0].mxu0
    %609 = vmatprep.mubr.bf16.mxu0 0
    %610 = vmatmul.mubr.bf16.gmra.mrb[0].mxu0 %v449
    %v611 = vpop.f32.mrb[0].mxu0
    %v612 = vadd.f32 %v471, %v611
    %v613 = vpop.f32.mrb[0].mxu0
    %v614 = vpop.f32.mrb[0].mxu0
    %v615 = vadd.f32 %v471, %v614
    %v616 = vpop.f32.mrb[0].mxu0
    %617 = vdwg.mxu0
    %v618 = vmax.f32 %v556, 0.0
    %v619 = vmax.f32 %v559, 0.0
    %v620 = vmax.f32 %v564, 0.0
    %v621 = vmax.f32 %v567, 0.0
    %v622 = vmax.f32 %v572, 0.0
    %v623 = vmax.f32 %v575, 0.0
    %v624 = vmax.f32 %v580, 0.0
    %v625 = vmax.f32 %v583, 0.0
    %v626 = vmax.f32 %v588, 0.0
    %v627 = vmax.f32 %v591, 0.0
    %v628 = vmax.f32 %v596, 0.0
    %v629 = vmax.f32 %v599, 0.0
    %v630 = vmax.f32 %v604, 0.0
    %v631 = vmax.f32 %v607, 0.0
    %v632 = vmax.f32 %v612, 0.0
    %v633 = vmax.f32 %v615, 0.0
    %v634 = vpack.c.bf16 %v619, %v618
    %v635 = vpack.c.bf16 %v621, %v620
    %v636 = vpack.c.bf16 %v623, %v622
    %v637 = vpack.c.bf16 %v625, %v624
    %v638 = vpack.c.bf16 %v627, %v626
    %v639 = vpack.c.bf16 %v629, %v628
    %v640 = vpack.c.bf16 %v631, %v630
    %v641 = vpack.c.bf16 %v633, %v632
    %v642 = vld [vmem:[%s6] sm:$0xf]
    %v643 = vld [vmem:[%s6 + $0x4] sm:$0xf]
    %v644 = vld [vmem:[%s6 + $0x8] sm:$0xf]
    %v645 = vld [vmem:[%s6 + $0xc] sm:$0xf]
    %v646 = vld [vmem:[%s6 + $0x10] sm:$0xf]
    %v647 = vld [vmem:[%s6 + $0x14] sm:$0xf]
    %v648 = vld [vmem:[%s6 + $0x18] sm:$0xf]
    %v649 = vld [vmem:[%s6 + $0x1c] sm:$0xf]
    %v650 = vld [vmem:[%s6 + $0x20] sm:$0xf]
    %v651 = vld [vmem:[%s6 + $0x24] sm:$0xf]
    %v652 = vld [vmem:[%s6 + $0x28] sm:$0xf]
    %v653 = vld [vmem:[%s6 + $0x2c] sm:$0xf]
    %v654 = vld [vmem:[%s6 + $0x30] sm:$0xf]
    %v655 = vld [vmem:[%s6 + $0x34] sm:$0xf]
    %v656 = vld [vmem:[%s6 + $0x38] sm:$0xf]
    %v657 = vld [vmem:[%s6 + $0x3c] sm:$0xf]
    %v658 = vld [vmem:[%s7] sm:$0x1]
    %v660 = vlaneseq
    %v661 = vshrl.u32 %v660, 7
    %v662 = vsub.s32 0, %v661
    %v663 = vrot.slane %v658, %v662
    %v681 = vunpack.c.l.b16 %v642
    %v682 = vunpack.c.l.b16 %v643
    %v683 = vunpack.c.l.b16 %v644
    %v684 = vunpack.c.l.b16 %v645
    %v685 = vunpack.c.l.b16 %v646
    %v686 = vunpack.c.l.b16 %v647
    %v687 = vunpack.c.l.b16 %v648
    %v688 = vunpack.c.l.b16 %v649
    %v689 = vunpack.c.l.b16 %v650
    %v690 = vunpack.c.l.b16 %v651
    %v691 = vunpack.c.l.b16 %v652
    %v692 = vunpack.c.l.b16 %v653
    %v693 = vunpack.c.l.b16 %v654
    %v694 = vunpack.c.l.b16 %v655
    %v695 = vunpack.c.l.b16 %v656
    %v696 = vunpack.c.l.b16 %v657
    %v697 = vpack.c.b16 %v682, %v681
    %v698 = vpack.c.b16 %v684, %v683
    %v699 = vpack.c.b16 %v686, %v685
    %v700 = vpack.c.b16 %v688, %v687
    %v701 = vpack.c.b16 %v690, %v689
    %v702 = vpack.c.b16 %v692, %v691
    %v703 = vpack.c.b16 %v694, %v693
    %v704 = vpack.c.b16 %v696, %v695
    %713 = vmatprep.subr.bf16.mxu0 0
    %714 = vmatpush1.bf16.msra.mxu0 %v697
    %715 = vmatprep.subr.bf16.mxu0 0
    %716 = vmatpush1.bf16.msra.mxu0 %v698
    %717 = vmatprep.subr.bf16.mxu0 0
    %718 = vmatpush1.bf16.msra.mxu0 %v699
    %719 = vmatprep.subr.bf16.mxu0 0
    %720 = vmatpush1.bf16.msra.mxu0 %v700
    %721 = vmatprep.subr.bf16.mxu0 0
    %722 = vmatpush1.bf16.msra.mxu0 %v701
    %723 = vmatprep.subr.bf16.mxu0 0
    %724 = vmatpush1.bf16.msra.mxu0 %v702
    %725 = vmatprep.subr.bf16.mxu0 0
    %726 = vmatpush1.bf16.msra.mxu0 %v703
    %727 = vmatprep.subr.bf16.mxu0 0
    %728 = vmatpush1.bf16.msra.mxu0 %v704
    %729 = vmatprep.subr.bf16.mxu0 0
    %730 = vmatpush1.bf16.msra.mxu0 0
    %731 = vmatprep.subr.bf16.mxu0 0
    %732 = vmatpush1.bf16.msra.mxu0 0
    %733 = vmatprep.subr.bf16.mxu0 0
    %734 = vmatpush1.bf16.msra.mxu0 0
    %735 = vmatprep.subr.bf16.mxu0 0
    %736 = vmatpush1.bf16.msra.mxu0 0
    %737 = vmatprep.subr.bf16.mxu0 0
    %738 = vmatpush1.bf16.msra.mxu0 0
    %739 = vmatprep.subr.bf16.mxu0 0
    %740 = vmatpush1.bf16.msra.mxu0 0
    %741 = vmatprep.subr.bf16.mxu0 0
    %742 = vmatpush1.bf16.msra.mxu0 0
    %743 = vmatprep.subr.bf16.mxu0 0
    %744 = vmatpush1.bf16.msra.mxu0 0
    %745 = vmatprep.mubr.bf16.mxu0 0
    %746 = vmatmul.mubr.bf16.gmra.mrb[0].mxu0 %v634
    %v747 = vpop.f32.mrb[0].mxu0
    %v748 = vadd.f32 %v663, %v747
    %v749 = vpop.f32.mrb[0].mxu0
    %v750 = vpop.f32.mrb[0].mxu0
    %v751 = vadd.f32 %v663, %v750
    %v752 = vpop.f32.mrb[0].mxu0
    %753 = vmatprep.mubr.bf16.mxu0 0
    %754 = vmatmul.mubr.bf16.gmra.mrb[0].mxu0 %v635
    %v755 = vpop.f32.mrb[0].mxu0
    %v756 = vadd.f32 %v663, %v755
    %v757 = vpop.f32.mrb[0].mxu0
    %v758 = vpop.f32.mrb[0].mxu0
    %v759 = vadd.f32 %v663, %v758
    %v760 = vpop.f32.mrb[0].mxu0
    %761 = vmatprep.mubr.bf16.mxu0 0
    %762 = vmatmul.mubr.bf16.gmra.mrb[0].mxu0 %v636
    %v763 = vpop.f32.mrb[0].mxu0
    %v764 = vadd.f32 %v663, %v763
    %v765 = vpop.f32.mrb[0].mxu0
    %v766 = vpop.f32.mrb[0].mxu0
    %v767 = vadd.f32 %v663, %v766
    %v768 = vpop.f32.mrb[0].mxu0
    %769 = vmatprep.mubr.bf16.mxu0 0
    %770 = vmatmul.mubr.bf16.gmra.mrb[0].mxu0 %v637
    %v771 = vpop.f32.mrb[0].mxu0
    %v772 = vadd.f32 %v663, %v771
    %v773 = vpop.f32.mrb[0].mxu0
    %v774 = vpop.f32.mrb[0].mxu0
    %v775 = vadd.f32 %v663, %v774
    %v776 = vpop.f32.mrb[0].mxu0
    %777 = vmatprep.mubr.bf16.mxu0 0
    %778 = vmatmul.mubr.bf16.gmra.mrb[0].mxu0 %v638
    %v779 = vpop.f32.mrb[0].mxu0
    %v780 = vadd.f32 %v663, %v779
    %v781 = vpop.f32.mrb[0].mxu0
    %v782 = vpop.f32.mrb[0].mxu0
    %v783 = vadd.f32 %v663, %v782
    %v784 = vpop.f32.mrb[0].mxu0
    %785 = vmatprep.mubr.bf16.mxu0 0
    %786 = vmatmul.mubr.bf16.gmra.mrb[0].mxu0 %v639
    %v787 = vpop.f32.mrb[0].mxu0
    %v788 = vadd.f32 %v663, %v787
    %v789 = vpop.f32.mrb[0].mxu0
    %v790 = vpop.f32.mrb[0].mxu0
    %v791 = vadd.f32 %v663, %v790
    %v792 = vpop.f32.mrb[0].mxu0
    %793 = vmatprep.mubr.bf16.mxu0 0
    %794 = vmatmul.mubr.bf16.gmra.mrb[0].mxu0 %v640
    %v795 = vpop.f32.mrb[0].mxu0
    %v796 = vadd.f32 %v663, %v795
    %v797 = vpop.f32.mrb[0].mxu0
    %v798 = vpop.f32.mrb[0].mxu0
    %v799 = vadd.f32 %v663, %v798
    %v800 = vpop.f32.mrb[0].mxu0
    %801 = vmatprep.mubr.bf16.mxu0 0
    %802 = vmatmul.mubr.bf16.gmra.mrb[0].mxu0 %v641
    %v803 = vpop.f32.mrb[0].mxu0
    %v804 = vadd.f32 %v663, %v803
    %v805 = vpop.f32.mrb[0].mxu0
    %v806 = vpop.f32.mrb[0].mxu0
    %v807 = vadd.f32 %v663, %v806
    %v808 = vpop.f32.mrb[0].mxu0
    %809 = vdwg.mxu0
    %v810 = vmax.f32 %v748, 0.0
    %v811 = vmax.f32 %v751, 0.0
    %v812 = vmax.f32 %v756, 0.0
    %v813 = vmax.f32 %v759, 0.0
    %v814 = vmax.f32 %v764, 0.0
    %v815 = vmax.f32 %v767, 0.0
    %v816 = vmax.f32 %v772, 0.0
    %v817 = vmax.f32 %v775, 0.0
    %v818 = vmax.f32 %v780, 0.0
    %v819 = vmax.f32 %v783, 0.0
    %v820 = vmax.f32 %v788, 0.0
    %v821 = vmax.f32 %v791, 0.0
    %v822 = vmax.f32 %v796, 0.0
    %v823 = vmax.f32 %v799, 0.0
    %v824 = vmax.f32 %v804, 0.0
    %v825 = vmax.f32 %v807, 0.0
    %v826 = vpack.c.bf16 %v811, %v810
    %v827 = vpack.c.bf16 %v813, %v812
    %v828 = vpack.c.bf16 %v815, %v814
    %v829 = vpack.c.bf16 %v817, %v816
    %v830 = vpack.c.bf16 %v819, %v818
    %v831 = vpack.c.bf16 %v821, %v820
    %v832 = vpack.c.bf16 %v823, %v822
    %v833 = vpack.c.bf16 %v825, %v824
    %v842 = vunpack.c.l.b16 %v826
    %v843 = vunpack.c.h.b16 %v826
    %v844 = vunpack.c.l.b16 %v827
    %v845 = vunpack.c.h.b16 %v827
    %v846 = vunpack.c.l.b16 %v828
    %v847 = vunpack.c.h.b16 %v828
    %v848 = vunpack.c.l.b16 %v829
    %v849 = vunpack.c.h.b16 %v829
    %v850 = vunpack.c.l.b16 %v830
    %v851 = vunpack.c.h.b16 %v830
    %v852 = vunpack.c.l.b16 %v831
    %v853 = vunpack.c.h.b16 %v831
    %v854 = vunpack.c.l.b16 %v832
    %v855 = vunpack.c.h.b16 %v832
    %v856 = vunpack.c.l.b16 %v833
    %v857 = vunpack.c.h.b16 %v833
    %v858 = vpack.c.b16 %v842, %v842
    %v859 = vpack.c.b16 %v843, %v843
    %v860 = vpack.c.b16 %v844, %v844
    %v861 = vpack.c.b16 %v845, %v845
    %v862 = vpack.c.b16 %v846, %v846
    %v863 = vpack.c.b16 %v847, %v847
    %v864 = vpack.c.b16 %v848, %v848
    %v865 = vpack.c.b16 %v849, %v849
    %v866 = vpack.c.b16 %v850, %v850
    %v867 = vpack.c.b16 %v851, %v851
    %v868 = vpack.c.b16 %v852, %v852
    %v869 = vpack.c.b16 %v853, %v853
    %v870 = vpack.c.b16 %v854, %v854
    %v871 = vpack.c.b16 %v855, %v855
    %v872 = vpack.c.b16 %v856, %v856
    %v873 = vpack.c.b16 %v857, %v857
    %890 = vst [vmem:[%s8] sm:$0xf] %v858
    %891 = vst [vmem:[%s8 + $0x4] sm:$0xf] %v859
    %892 = vst [vmem:[%s8 + $0x8] sm:$0xf] %v860
    %893 = vst [vmem:[%s8 + $0xc] sm:$0xf] %v861
    %894 = vst [vmem:[%s8 + $0x10] sm:$0xf] %v862
    %895 = vst [vmem:[%s8 + $0x14] sm:$0xf] %v863
    %896 = vst [vmem:[%s8 + $0x18] sm:$0xf] %v864
    %897 = vst [vmem:[%s8 + $0x1c] sm:$0xf] %v865
    %898 = vst [vmem:[%s8 + $0x20] sm:$0xf] %v866
    %899 = vst [vmem:[%s8 + $0x24] sm:$0xf] %v867
    %900 = vst [vmem:[%s8 + $0x28] sm:$0xf] %v868
    %901 = vst [vmem:[%s8 + $0x2c] sm:$0xf] %v869
    %902 = vst [vmem:[%s8 + $0x30] sm:$0xf] %v870
    %903 = vst [vmem:[%s8 + $0x34] sm:$0xf] %v871
    %904 = vst [vmem:[%s8 + $0x38] sm:$0xf] %v872
    %905 = vst [vmem:[%s8 + $0x3c] sm:$0xf] %v873
  $region37: #{gin_forward.4} parent=0 // pred_fallthru
    _
  // Predicated region
  $region38: #{gin_forward.4} parent=0 // pred_check
    _
  $region39: #{gin_forward.4} parent=0 // pred_check_branch
    %907 = sbr.rel (0) target = $region41
  $region40: #{gin_forward.4} parent=0 // pred_region
    _
  $region41: #{gin_forward.4} parent=0 // pred_fallthru
    _
  // Predicated region
  $region42: #{gin_forward.4} parent=0 // pred_check
    _
  $region43: #{gin_forward.4} parent=0 // pred_check_branch
    %909 = sbr.rel (0) target = $region45
  $region44: #{gin_forward.4} parent=0 // pred_region
    _
  $region45: #{gin_forward.4} parent=0 // pred_fallthru
    _

</llo_original>
